<compile_context>
chip_gen: v7x
topology: tpu7x:2x2x1
jax: 0.10.0
libtpu: 0.0.40
codegen_flags: <defaults>
</compile_context>

<pallas_src>
import functools

import jax
import jax.numpy as jnp
from jax.experimental import pallas as pl
from jax.experimental.pallas import tpu as pltpu


def _fused_kernel(x_ref, w12_ref, b12_ref, w3_ref, b3_ref, o_ref, *,
                  min_value, max_value):
    """One grid step = (batch n, deconv sub-position pq = p*4 + q).

    For every padded-input pixel (i, j):
      t[c]  = sum_ci x[ci, i, j] * W12[ci, c*16 + pq] + b12[c*16 + pq]
      a[c]  = relu6(clamp_max(clamp_min(t[c], min), max))
      o[co] = sum_c a[c] * w3[c, co] + b3[co]
    Output is written as a (4, H1, W1) channel-first slab (lane dim = W1).
    """
    pq = pl.program_id(1)
    w12_base = pq * 24          # 3 * 8 scalars per (p, q)
    b12_base = pq * 8

    x0 = x_ref[0, 0, :, :]
    x1 = x_ref[0, 1, :, :]
    x2 = x_ref[0, 2, :, :]

    accs = [None, None, None, None]
    for c in range(8):
        t = (x0 * w12_ref[w12_base + c]
             + x1 * w12_ref[w12_base + 8 + c]
             + x2 * w12_ref[w12_base + 16 + c]
             + b12_ref[b12_base + c])
        # torch.clamp_min / torch.clamp_max / nn.ReLU6
        t = jnp.maximum(t, min_value)
        t = jnp.minimum(t, max_value)
        t = jnp.minimum(jnp.maximum(t, 0.0), 6.0)
        for co in range(4):
            contrib = t * w3_ref[c * 4 + co]
            accs[co] = contrib if accs[co] is None else accs[co] + contrib

    for co in range(4):
        o_ref[0, co, :, :] = accs[co] + b3_ref[co]


def model_forward(x_nchw, params, min_value=-1.8, max_value=3.7):
    w1, b1, w2, b2, w3, b3 = params          # PyTorch-shaped weights
    N, _, H, W = x_nchw.shape
    H1, W1 = H + 2, W + 2                    # spatial size after conv1 pad=1

    # --- pre-compose conv1 (1x1) and deconv (stride==kernel) weights -------
    w1_mat = w1.reshape(8, 3).T              # (ci=3, c=8)
    w2_mat = w2.reshape(8, 128)              # (c=8, co*16 + p*4 + q)
    w12 = w1_mat @ w2_mat                    # (3, 128)
    b12 = b1 @ w2_mat + jnp.repeat(b2, 16)   # (128,)

    # per-(p,q) scalar tables, flattened for SMEM
    w12_r = jnp.transpose(w12.reshape(3, 8, 16), (2, 0, 1)).reshape(-1)  # idx = pq*24 + ci*8 + c
    b12_r = jnp.transpose(b12.reshape(8, 16), (1, 0)).reshape(-1)        # idx = pq*8 + c
    w3_r = w3.reshape(4, 8).T.reshape(-1)    # idx = c*4 + co
    b3_r = b3                                # (4,)

    # zero-pad spatially (conv1 padding=1); stays NCHW, tiny copy.
    x_pad = jnp.pad(x_nchw, ((0, 0), (0, 0), (1, 1), (1, 1)))  # (N,3,H1,W1)

    kernel = functools.partial(_fused_kernel, min_value=min_value,
                               max_value=max_value)

    flops = int(N) * 16 * H1 * W1 * 112
    bytes_accessed = 4 * (N * 3 * H1 * W1 + N * 16 * 4 * H1 * W1 + 548)

    out6 = pl.pallas_call(
        kernel,
        out_shape=jax.ShapeDtypeStruct((N * 16, 4, H1, W1), jnp.float32),
        grid_spec=pltpu.PrefetchScalarGridSpec(
            num_scalar_prefetch=0,
            grid=(N, 16),                    # pq innermost -> input block reused
            in_specs=[
                pl.BlockSpec((1, 3, H1, W1), lambda n, pq: (n, 0, 0, 0)),
                pl.BlockSpec(memory_space=pltpu.MemorySpace.SMEM),
                pl.BlockSpec(memory_space=pltpu.MemorySpace.SMEM),
                pl.BlockSpec(memory_space=pltpu.MemorySpace.SMEM),
                pl.BlockSpec(memory_space=pltpu.MemorySpace.SMEM),
            ],
            out_specs=pl.BlockSpec((1, 4, H1, W1),
                                   lambda n, pq: (n * 16 + pq, 0, 0, 0)),
        ),
        compiler_params=pltpu.CompilerParams(
            dimension_semantics=("parallel", "parallel")),
        cost_estimate=pl.CostEstimate(flops=flops, transcendentals=0,
                                      bytes_accessed=bytes_accessed),
    )(x_pad, w12_r, b12_r, w3_r, b3_r)

    # out6[n*16 + p*4 + q, co, i, j] == out_uncropped[n, co, 4i+p, 4j+q]
    out6 = out6.reshape(N, 4, 4, 4, H1, W1)            # (n, p, q, co, i, j)
    out_unc = jnp.transpose(out6, (0, 3, 4, 1, 5, 2))  # (n, co, i, p, j, q)
    out_unc = out_unc.reshape(N, 4, 4 * H1, 4 * W1)
    # ConvTranspose2d padding=3 -> crop 3 from every side; result is NCHW.
    return out_unc[:, :, 3:4 * H1 - 3, 3:4 * W1 - 3]


def reference_forward(x, params, min_value=-1.8, max_value=3.7):
    """Pure-JAX reference using lax convolutions (NCHW)."""
    w1, b1, w2, b2, w3, b3 = params
    dn = ("NCHW", "OIHW", "NCHW")
    v1 = jax.lax.conv_general_dilated(
        x, w1, (1, 1), ((1, 1), (1, 1)),
        dimension_numbers=dn) + b1.reshape(1, -1, 1, 1)
    # ConvTranspose2d(8,8,4,s=4,p=3) == conv with lhs_dilation=4,
    # padding k-1-p = 0, transposed + spatially flipped kernel.
    w2t = jnp.flip(jnp.transpose(w2, (1, 0, 2, 3)), (2, 3))
    v2 = jax.lax.conv_general_dilated(
        v1, w2t, (1, 1), ((0, 0), (0, 0)), lhs_dilation=(4, 4),
        dimension_numbers=dn) + b2.reshape(1, -1, 1, 1)
    v3 = jnp.maximum(v2, min_value)
    v4 = jnp.minimum(v3, max_value)
    v5 = jnp.clip(v4, 0.0, 6.0)
    v7 = jax.lax.conv_general_dilated(
        v5, w3, (1, 1), ((0, 0), (0, 0)),
        dimension_numbers=dn) + b3.reshape(1, -1, 1, 1)
    return v7


def init_params(key):
    keys = jax.random.split(key, 6)

    def u(k, shape, fan_in):
        bound = 1.0 / jnp.sqrt(float(fan_in))
        return jax.random.uniform(k, shape, jnp.float32, -bound, bound)

    w1 = u(keys[0], (8, 3, 1, 1), 3)          # Conv2d(3, 8, 1)
    b1 = u(keys[1], (8,), 3)
    w2 = u(keys[2], (8, 8, 4, 4), 8 * 16)     # ConvTranspose2d(8, 8, 4)
    b2 = u(keys[3], (8,), 8 * 16)
    w3 = u(keys[4], (4, 8, 1, 1), 8)          # Conv2d(8, 4, 1)
    b3 = u(keys[5], (4,), 8)
    return (w1, b1, w2, b2, w3, b3)


if __name__ == "__main__":
    key = jax.random.PRNGKey(0)
    k_x, k_p = jax.random.split(key)
    # Small shape consistent with the module: batch=1, channels=3, spatial=16.
    x1 = jax.random.normal(k_x, (1, 3, 16, 16), jnp.float32)
    params = init_params(k_p)

    fwd = jax.jit(model_forward)
    out = jax.block_until_ready(fwd(x1, params))

    ref = jax.block_until_ready(reference_forward(x1, params))
    assert out.shape == ref.shape == (1, 4, 66, 66), (out.shape, ref.shape)
    assert jnp.allclose(out, ref, atol=1e-4, rtol=1e-4), float(
        jnp.max(jnp.abs(out - ref)))

    print("KERNEL_OK")
</pallas_src>

<mosaic_0001>
module attributes {stable_mosaic.version = 11 : i64} {
  func.func @_fused_kernel(%arg0: i32, %arg1: i32, %arg2: memref<1x3x18x18xf32, #tpu.memory_space<vmem>>, %arg3: memref<384xf32, #tpu.memory_space<smem>>, %arg4: memref<128xf32, #tpu.memory_space<smem>>, %arg5: memref<32xf32, #tpu.memory_space<smem>>, %arg6: memref<4xf32, #tpu.memory_space<smem>>, %arg7: memref<1x4x18x18xf32, #tpu.memory_space<vmem>>) attributes {dimension_semantics = [#tpu.dimension_semantics<parallel>, #tpu.dimension_semantics<parallel>], iteration_bounds = array<i64: 1, 16>, scalar_prefetch = 0 : i64, scratch_operands = 0 : i64, tpu.core_type = #tpu.core_type<tc>, window_params = [{transform_indices = @transform_0, window_bounds = array<i64: 1, 3, 18, 18>}, {transform_indices = @transform_1, window_bounds = array<i64: 384>}, {transform_indices = @transform_2, window_bounds = array<i64: 128>}, {transform_indices = @transform_3, window_bounds = array<i64: 32>}, {transform_indices = @transform_4, window_bounds = array<i64: 4>}, {transform_indices = @transform_5, window_bounds = array<i64: 1, 4, 18, 18>}]} {
    %c24_i32 = arith.constant 24 : i32
    %0 = arith.muli %arg1, %c24_i32 : i32
    %c8_i32 = arith.constant 8 : i32
    %1 = arith.muli %arg1, %c8_i32 : i32
    %c0 = arith.constant 0 : index
    %c0_0 = arith.constant 0 : index
    %c0_1 = arith.constant 0 : index
    %c0_2 = arith.constant 0 : index
    %2 = vector.load %arg2[%c0, %c0_0, %c0_1, %c0_2] : memref<1x3x18x18xf32, #tpu.memory_space<vmem>>, vector<1x1x18x18xf32>
    %3 = vector.shape_cast %2 : vector<1x1x18x18xf32> to vector<18x18xf32>
    %c0_3 = arith.constant 0 : index
    %c1 = arith.constant 1 : index
    %c0_4 = arith.constant 0 : index
    %c0_5 = arith.constant 0 : index
    %4 = vector.load %arg2[%c0_3, %c1, %c0_4, %c0_5] : memref<1x3x18x18xf32, #tpu.memory_space<vmem>>, vector<1x1x18x18xf32>
    %5 = vector.shape_cast %4 : vector<1x1x18x18xf32> to vector<18x18xf32>
    %c0_6 = arith.constant 0 : index
    %c2 = arith.constant 2 : index
    %c0_7 = arith.constant 0 : index
    %c0_8 = arith.constant 0 : index
    %6 = vector.load %arg2[%c0_6, %c2, %c0_7, %c0_8] : memref<1x3x18x18xf32, #tpu.memory_space<vmem>>, vector<1x1x18x18xf32>
    %7 = vector.shape_cast %6 : vector<1x1x18x18xf32> to vector<18x18xf32>
    %c0_i32 = arith.constant 0 : i32
    %8 = arith.addi %0, %c0_i32 : i32
    %9 = arith.index_cast %8 : i32 to index
    %10 = memref.load %arg3[%9] : memref<384xf32, #tpu.memory_space<smem>>
    %11 = vector.broadcast %10 : f32 to vector<18x18xf32>
    %12 = arith.mulf %3, %11 : vector<18x18xf32>
    %c8_i32_9 = arith.constant 8 : i32
    %13 = arith.addi %0, %c8_i32_9 : i32
    %c0_i32_10 = arith.constant 0 : i32
    %14 = arith.addi %13, %c0_i32_10 : i32
    %15 = arith.index_cast %14 : i32 to index
    %16 = memref.load %arg3[%15] : memref<384xf32, #tpu.memory_space<smem>>
    %17 = vector.broadcast %16 : f32 to vector<18x18xf32>
    %18 = arith.mulf %5, %17 : vector<18x18xf32>
    %19 = arith.addf %12, %18 : vector<18x18xf32>
    %c16_i32 = arith.constant 16 : i32
    %20 = arith.addi %0, %c16_i32 : i32
    %c0_i32_11 = arith.constant 0 : i32
    %21 = arith.addi %20, %c0_i32_11 : i32
    %22 = arith.index_cast %21 : i32 to index
    %23 = memref.load %arg3[%22] : memref<384xf32, #tpu.memory_space<smem>>
    %24 = vector.broadcast %23 : f32 to vector<18x18xf32>
    %25 = arith.mulf %7, %24 : vector<18x18xf32>
    %26 = arith.addf %19, %25 : vector<18x18xf32>
    %c0_i32_12 = arith.constant 0 : i32
    %27 = arith.addi %1, %c0_i32_12 : i32
    %28 = arith.index_cast %27 : i32 to index
    %29 = memref.load %arg4[%28] : memref<128xf32, #tpu.memory_space<smem>>
    %30 = vector.broadcast %29 : f32 to vector<18x18xf32>
    %31 = arith.addf %26, %30 : vector<18x18xf32>
    %cst = arith.constant -1.800000e+00 : f32
    %32 = vector.broadcast %cst : f32 to vector<18x18xf32>
    %33 = arith.maximumf %31, %32 : vector<18x18xf32>
    %cst_13 = arith.constant 3.700000e+00 : f32
    %34 = vector.broadcast %cst_13 : f32 to vector<18x18xf32>
    %35 = arith.minimumf %33, %34 : vector<18x18xf32>
    %cst_14 = arith.constant 0.000000e+00 : f32
    %36 = vector.broadcast %cst_14 : f32 to vector<18x18xf32>
    %37 = arith.maximumf %35, %36 : vector<18x18xf32>
    %cst_15 = arith.constant 6.000000e+00 : f32
    %38 = vector.broadcast %cst_15 : f32 to vector<18x18xf32>
    %39 = arith.minimumf %37, %38 : vector<18x18xf32>
    %c0_16 = arith.constant 0 : index
    %40 = memref.load %arg5[%c0_16] : memref<32xf32, #tpu.memory_space<smem>>
    %41 = vector.broadcast %40 : f32 to vector<18x18xf32>
    %42 = arith.mulf %39, %41 : vector<18x18xf32>
    %c1_17 = arith.constant 1 : index
    %43 = memref.load %arg5[%c1_17] : memref<32xf32, #tpu.memory_space<smem>>
    %44 = vector.broadcast %43 : f32 to vector<18x18xf32>
    %45 = arith.mulf %39, %44 : vector<18x18xf32>
    %c2_18 = arith.constant 2 : index
    %46 = memref.load %arg5[%c2_18] : memref<32xf32, #tpu.memory_space<smem>>
    %47 = vector.broadcast %46 : f32 to vector<18x18xf32>
    %48 = arith.mulf %39, %47 : vector<18x18xf32>
    %c3 = arith.constant 3 : index
    %49 = memref.load %arg5[%c3] : memref<32xf32, #tpu.memory_space<smem>>
    %50 = vector.broadcast %49 : f32 to vector<18x18xf32>
    %51 = arith.mulf %39, %50 : vector<18x18xf32>
    %c1_i32 = arith.constant 1 : i32
    %52 = arith.addi %0, %c1_i32 : i32
    %53 = arith.index_cast %52 : i32 to index
    %54 = memref.load %arg3[%53] : memref<384xf32, #tpu.memory_space<smem>>
    %55 = vector.broadcast %54 : f32 to vector<18x18xf32>
    %56 = arith.mulf %3, %55 : vector<18x18xf32>
    %c8_i32_19 = arith.constant 8 : i32
    %57 = arith.addi %0, %c8_i32_19 : i32
    %c1_i32_20 = arith.constant 1 : i32
    %58 = arith.addi %57, %c1_i32_20 : i32
    %59 = arith.index_cast %58 : i32 to index
    %60 = memref.load %arg3[%59] : memref<384xf32, #tpu.memory_space<smem>>
    %61 = vector.broadcast %60 : f32 to vector<18x18xf32>
    %62 = arith.mulf %5, %61 : vector<18x18xf32>
    %63 = arith.addf %56, %62 : vector<18x18xf32>
    %c16_i32_21 = arith.constant 16 : i32
    %64 = arith.addi %0, %c16_i32_21 : i32
    %c1_i32_22 = arith.constant 1 : i32
    %65 = arith.addi %64, %c1_i32_22 : i32
    %66 = arith.index_cast %65 : i32 to index
    %67 = memref.load %arg3[%66] : memref<384xf32, #tpu.memory_space<smem>>
    %68 = vector.broadcast %67 : f32 to vector<18x18xf32>
    %69 = arith.mulf %7, %68 : vector<18x18xf32>
    %70 = arith.addf %63, %69 : vector<18x18xf32>
    %c1_i32_23 = arith.constant 1 : i32
    %71 = arith.addi %1, %c1_i32_23 : i32
    %72 = arith.index_cast %71 : i32 to index
    %73 = memref.load %arg4[%72] : memref<128xf32, #tpu.memory_space<smem>>
    %74 = vector.broadcast %73 : f32 to vector<18x18xf32>
    %75 = arith.addf %70, %74 : vector<18x18xf32>
    %cst_24 = arith.constant -1.800000e+00 : f32
    %76 = vector.broadcast %cst_24 : f32 to vector<18x18xf32>
    %77 = arith.maximumf %75, %76 : vector<18x18xf32>
    %cst_25 = arith.constant 3.700000e+00 : f32
    %78 = vector.broadcast %cst_25 : f32 to vector<18x18xf32>
    %79 = arith.minimumf %77, %78 : vector<18x18xf32>
    %cst_26 = arith.constant 0.000000e+00 : f32
    %80 = vector.broadcast %cst_26 : f32 to vector<18x18xf32>
    %81 = arith.maximumf %79, %80 : vector<18x18xf32>
    %cst_27 = arith.constant 6.000000e+00 : f32
    %82 = vector.broadcast %cst_27 : f32 to vector<18x18xf32>
    %83 = arith.minimumf %81, %82 : vector<18x18xf32>
    %c4 = arith.constant 4 : index
    %84 = memref.load %arg5[%c4] : memref<32xf32, #tpu.memory_space<smem>>
    %85 = vector.broadcast %84 : f32 to vector<18x18xf32>
    %86 = arith.mulf %83, %85 : vector<18x18xf32>
    %87 = arith.addf %42, %86 : vector<18x18xf32>
    %c5 = arith.constant 5 : index
    %88 = memref.load %arg5[%c5] : memref<32xf32, #tpu.memory_space<smem>>
    %89 = vector.broadcast %88 : f32 to vector<18x18xf32>
    %90 = arith.mulf %83, %89 : vector<18x18xf32>
    %91 = arith.addf %45, %90 : vector<18x18xf32>
    %c6 = arith.constant 6 : index
    %92 = memref.load %arg5[%c6] : memref<32xf32, #tpu.memory_space<smem>>
    %93 = vector.broadcast %92 : f32 to vector<18x18xf32>
    %94 = arith.mulf %83, %93 : vector<18x18xf32>
    %95 = arith.addf %48, %94 : vector<18x18xf32>
    %c7 = arith.constant 7 : index
    %96 = memref.load %arg5[%c7] : memref<32xf32, #tpu.memory_space<smem>>
    %97 = vector.broadcast %96 : f32 to vector<18x18xf32>
    %98 = arith.mulf %83, %97 : vector<18x18xf32>
    %99 = arith.addf %51, %98 : vector<18x18xf32>
    %c2_i32 = arith.constant 2 : i32
    %100 = arith.addi %0, %c2_i32 : i32
    %101 = arith.index_cast %100 : i32 to index
    %102 = memref.load %arg3[%101] : memref<384xf32, #tpu.memory_space<smem>>
    %103 = vector.broadcast %102 : f32 to vector<18x18xf32>
    %104 = arith.mulf %3, %103 : vector<18x18xf32>
    %c8_i32_28 = arith.constant 8 : i32
    %105 = arith.addi %0, %c8_i32_28 : i32
    %c2_i32_29 = arith.constant 2 : i32
    %106 = arith.addi %105, %c2_i32_29 : i32
    %107 = arith.index_cast %106 : i32 to index
    %108 = memref.load %arg3[%107] : memref<384xf32, #tpu.memory_space<smem>>
    %109 = vector.broadcast %108 : f32 to vector<18x18xf32>
    %110 = arith.mulf %5, %109 : vector<18x18xf32>
    %111 = arith.addf %104, %110 : vector<18x18xf32>
    %c16_i32_30 = arith.constant 16 : i32
    %112 = arith.addi %0, %c16_i32_30 : i32
    %c2_i32_31 = arith.constant 2 : i32
    %113 = arith.addi %112, %c2_i32_31 : i32
    %114 = arith.index_cast %113 : i32 to index
    %115 = memref.load %arg3[%114] : memref<384xf32, #tpu.memory_space<smem>>
    %116 = vector.broadcast %115 : f32 to vector<18x18xf32>
    %117 = arith.mulf %7, %116 : vector<18x18xf32>
    %118 = arith.addf %111, %117 : vector<18x18xf32>
    %c2_i32_32 = arith.constant 2 : i32
    %119 = arith.addi %1, %c2_i32_32 : i32
    %120 = arith.index_cast %119 : i32 to index
    %121 = memref.load %arg4[%120] : memref<128xf32, #tpu.memory_space<smem>>
    %122 = vector.broadcast %121 : f32 to vector<18x18xf32>
    %123 = arith.addf %118, %122 : vector<18x18xf32>
    %cst_33 = arith.constant -1.800000e+00 : f32
    %124 = vector.broadcast %cst_33 : f32 to vector<18x18xf32>
    %125 = arith.maximumf %123, %124 : vector<18x18xf32>
    %cst_34 = arith.constant 3.700000e+00 : f32
    %126 = vector.broadcast %cst_34 : f32 to vector<18x18xf32>
    %127 = arith.minimumf %125, %126 : vector<18x18xf32>
    %cst_35 = arith.constant 0.000000e+00 : f32
    %128 = vector.broadcast %cst_35 : f32 to vector<18x18xf32>
    %129 = arith.maximumf %127, %128 : vector<18x18xf32>
    %cst_36 = arith.constant 6.000000e+00 : f32
    %130 = vector.broadcast %cst_36 : f32 to vector<18x18xf32>
    %131 = arith.minimumf %129, %130 : vector<18x18xf32>
    %c8 = arith.constant 8 : index
    %132 = memref.load %arg5[%c8] : memref<32xf32, #tpu.memory_space<smem>>
    %133 = vector.broadcast %132 : f32 to vector<18x18xf32>
    %134 = arith.mulf %131, %133 : vector<18x18xf32>
    %135 = arith.addf %87, %134 : vector<18x18xf32>
    %c9 = arith.constant 9 : index
    %136 = memref.load %arg5[%c9] : memref<32xf32, #tpu.memory_space<smem>>
    %137 = vector.broadcast %136 : f32 to vector<18x18xf32>
    %138 = arith.mulf %131, %137 : vector<18x18xf32>
    %139 = arith.addf %91, %138 : vector<18x18xf32>
    %c10 = arith.constant 10 : index
    %140 = memref.load %arg5[%c10] : memref<32xf32, #tpu.memory_space<smem>>
    %141 = vector.broadcast %140 : f32 to vector<18x18xf32>
    %142 = arith.mulf %131, %141 : vector<18x18xf32>
    %143 = arith.addf %95, %142 : vector<18x18xf32>
    %c11 = arith.constant 11 : index
    %144 = memref.load %arg5[%c11] : memref<32xf32, #tpu.memory_space<smem>>
    %145 = vector.broadcast %144 : f32 to vector<18x18xf32>
    %146 = arith.mulf %131, %145 : vector<18x18xf32>
    %147 = arith.addf %99, %146 : vector<18x18xf32>
    %c3_i32 = arith.constant 3 : i32
    %148 = arith.addi %0, %c3_i32 : i32
    %149 = arith.index_cast %148 : i32 to index
    %150 = memref.load %arg3[%149] : memref<384xf32, #tpu.memory_space<smem>>
    %151 = vector.broadcast %150 : f32 to vector<18x18xf32>
    %152 = arith.mulf %3, %151 : vector<18x18xf32>
    %c8_i32_37 = arith.constant 8 : i32
    %153 = arith.addi %0, %c8_i32_37 : i32
    %c3_i32_38 = arith.constant 3 : i32
    %154 = arith.addi %153, %c3_i32_38 : i32
    %155 = arith.index_cast %154 : i32 to index
    %156 = memref.load %arg3[%155] : memref<384xf32, #tpu.memory_space<smem>>
    %157 = vector.broadcast %156 : f32 to vector<18x18xf32>
    %158 = arith.mulf %5, %157 : vector<18x18xf32>
    %159 = arith.addf %152, %158 : vector<18x18xf32>
    %c16_i32_39 = arith.constant 16 : i32
    %160 = arith.addi %0, %c16_i32_39 : i32
    %c3_i32_40 = arith.constant 3 : i32
    %161 = arith.addi %160, %c3_i32_40 : i32
    %162 = arith.index_cast %161 : i32 to index
    %163 = memref.load %arg3[%162] : memref<384xf32, #tpu.memory_space<smem>>
    %164 = vector.broadcast %163 : f32 to vector<18x18xf32>
    %165 = arith.mulf %7, %164 : vector<18x18xf32>
    %166 = arith.addf %159, %165 : vector<18x18xf32>
    %c3_i32_41 = arith.constant 3 : i32
    %167 = arith.addi %1, %c3_i32_41 : i32
    %168 = arith.index_cast %167 : i32 to index
    %169 = memref.load %arg4[%168] : memref<128xf32, #tpu.memory_space<smem>>
    %170 = vector.broadcast %169 : f32 to vector<18x18xf32>
    %171 = arith.addf %166, %170 : vector<18x18xf32>
    %cst_42 = arith.constant -1.800000e+00 : f32
    %172 = vector.broadcast %cst_42 : f32 to vector<18x18xf32>
    %173 = arith.maximumf %171, %172 : vector<18x18xf32>
    %cst_43 = arith.constant 3.700000e+00 : f32
    %174 = vector.broadcast %cst_43 : f32 to vector<18x18xf32>
    %175 = arith.minimumf %173, %174 : vector<18x18xf32>
    %cst_44 = arith.constant 0.000000e+00 : f32
    %176 = vector.broadcast %cst_44 : f32 to vector<18x18xf32>
    %177 = arith.maximumf %175, %176 : vector<18x18xf32>
    %cst_45 = arith.constant 6.000000e+00 : f32
    %178 = vector.broadcast %cst_45 : f32 to vector<18x18xf32>
    %179 = arith.minimumf %177, %178 : vector<18x18xf32>
    %c12 = arith.constant 12 : index
    %180 = memref.load %arg5[%c12] : memref<32xf32, #tpu.memory_space<smem>>
    %181 = vector.broadcast %180 : f32 to vector<18x18xf32>
    %182 = arith.mulf %179, %181 : vector<18x18xf32>
    %183 = arith.addf %135, %182 : vector<18x18xf32>
    %c13 = arith.constant 13 : index
    %184 = memref.load %arg5[%c13] : memref<32xf32, #tpu.memory_space<smem>>
    %185 = vector.broadcast %184 : f32 to vector<18x18xf32>
    %186 = arith.mulf %179, %185 : vector<18x18xf32>
    %187 = arith.addf %139, %186 : vector<18x18xf32>
    %c14 = arith.constant 14 : index
    %188 = memref.load %arg5[%c14] : memref<32xf32, #tpu.memory_space<smem>>
    %189 = vector.broadcast %188 : f32 to vector<18x18xf32>
    %190 = arith.mulf %179, %189 : vector<18x18xf32>
    %191 = arith.addf %143, %190 : vector<18x18xf32>
    %c15 = arith.constant 15 : index
    %192 = memref.load %arg5[%c15] : memref<32xf32, #tpu.memory_space<smem>>
    %193 = vector.broadcast %192 : f32 to vector<18x18xf32>
    %194 = arith.mulf %179, %193 : vector<18x18xf32>
    %195 = arith.addf %147, %194 : vector<18x18xf32>
    %c4_i32 = arith.constant 4 : i32
    %196 = arith.addi %0, %c4_i32 : i32
    %197 = arith.index_cast %196 : i32 to index
    %198 = memref.load %arg3[%197] : memref<384xf32, #tpu.memory_space<smem>>
    %199 = vector.broadcast %198 : f32 to vector<18x18xf32>
    %200 = arith.mulf %3, %199 : vector<18x18xf32>
    %c8_i32_46 = arith.constant 8 : i32
    %201 = arith.addi %0, %c8_i32_46 : i32
    %c4_i32_47 = arith.constant 4 : i32
    %202 = arith.addi %201, %c4_i32_47 : i32
    %203 = arith.index_cast %202 : i32 to index
    %204 = memref.load %arg3[%203] : memref<384xf32, #tpu.memory_space<smem>>
    %205 = vector.broadcast %204 : f32 to vector<18x18xf32>
    %206 = arith.mulf %5, %205 : vector<18x18xf32>
    %207 = arith.addf %200, %206 : vector<18x18xf32>
    %c16_i32_48 = arith.constant 16 : i32
    %208 = arith.addi %0, %c16_i32_48 : i32
    %c4_i32_49 = arith.constant 4 : i32
    %209 = arith.addi %208, %c4_i32_49 : i32
    %210 = arith.index_cast %209 : i32 to index
    %211 = memref.load %arg3[%210] : memref<384xf32, #tpu.memory_space<smem>>
    %212 = vector.broadcast %211 : f32 to vector<18x18xf32>
    %213 = arith.mulf %7, %212 : vector<18x18xf32>
    %214 = arith.addf %207, %213 : vector<18x18xf32>
    %c4_i32_50 = arith.constant 4 : i32
    %215 = arith.addi %1, %c4_i32_50 : i32
    %216 = arith.index_cast %215 : i32 to index
    %217 = memref.load %arg4[%216] : memref<128xf32, #tpu.memory_space<smem>>
    %218 = vector.broadcast %217 : f32 to vector<18x18xf32>
    %219 = arith.addf %214, %218 : vector<18x18xf32>
    %cst_51 = arith.constant -1.800000e+00 : f32
    %220 = vector.broadcast %cst_51 : f32 to vector<18x18xf32>
    %221 = arith.maximumf %219, %220 : vector<18x18xf32>
    %cst_52 = arith.constant 3.700000e+00 : f32
    %222 = vector.broadcast %cst_52 : f32 to vector<18x18xf32>
    %223 = arith.minimumf %221, %222 : vector<18x18xf32>
    %cst_53 = arith.constant 0.000000e+00 : f32
    %224 = vector.broadcast %cst_53 : f32 to vector<18x18xf32>
    %225 = arith.maximumf %223, %224 : vector<18x18xf32>
    %cst_54 = arith.constant 6.000000e+00 : f32
    %226 = vector.broadcast %cst_54 : f32 to vector<18x18xf32>
    %227 = arith.minimumf %225, %226 : vector<18x18xf32>
    %c16 = arith.constant 16 : index
    %228 = memref.load %arg5[%c16] : memref<32xf32, #tpu.memory_space<smem>>
    %229 = vector.broadcast %228 : f32 to vector<18x18xf32>
    %230 = arith.mulf %227, %229 : vector<18x18xf32>
    %231 = arith.addf %183, %230 : vector<18x18xf32>
    %c17 = arith.constant 17 : index
    %232 = memref.load %arg5[%c17] : memref<32xf32, #tpu.memory_space<smem>>
    %233 = vector.broadcast %232 : f32 to vector<18x18xf32>
    %234 = arith.mulf %227, %233 : vector<18x18xf32>
    %235 = arith.addf %187, %234 : vector<18x18xf32>
    %c18 = arith.constant 18 : index
    %236 = memref.load %arg5[%c18] : memref<32xf32, #tpu.memory_space<smem>>
    %237 = vector.broadcast %236 : f32 to vector<18x18xf32>
    %238 = arith.mulf %227, %237 : vector<18x18xf32>
    %239 = arith.addf %191, %238 : vector<18x18xf32>
    %c19 = arith.constant 19 : index
    %240 = memref.load %arg5[%c19] : memref<32xf32, #tpu.memory_space<smem>>
    %241 = vector.broadcast %240 : f32 to vector<18x18xf32>
    %242 = arith.mulf %227, %241 : vector<18x18xf32>
    %243 = arith.addf %195, %242 : vector<18x18xf32>
    %c5_i32 = arith.constant 5 : i32
    %244 = arith.addi %0, %c5_i32 : i32
    %245 = arith.index_cast %244 : i32 to index
    %246 = memref.load %arg3[%245] : memref<384xf32, #tpu.memory_space<smem>>
    %247 = vector.broadcast %246 : f32 to vector<18x18xf32>
    %248 = arith.mulf %3, %247 : vector<18x18xf32>
    %c8_i32_55 = arith.constant 8 : i32
    %249 = arith.addi %0, %c8_i32_55 : i32
    %c5_i32_56 = arith.constant 5 : i32
    %250 = arith.addi %249, %c5_i32_56 : i32
    %251 = arith.index_cast %250 : i32 to index
    %252 = memref.load %arg3[%251] : memref<384xf32, #tpu.memory_space<smem>>
    %253 = vector.broadcast %252 : f32 to vector<18x18xf32>
    %254 = arith.mulf %5, %253 : vector<18x18xf32>
    %255 = arith.addf %248, %254 : vector<18x18xf32>
    %c16_i32_57 = arith.constant 16 : i32
    %256 = arith.addi %0, %c16_i32_57 : i32
    %c5_i32_58 = arith.constant 5 : i32
    %257 = arith.addi %256, %c5_i32_58 : i32
    %258 = arith.index_cast %257 : i32 to index
    %259 = memref.load %arg3[%258] : memref<384xf32, #tpu.memory_space<smem>>
    %260 = vector.broadcast %259 : f32 to vector<18x18xf32>
    %261 = arith.mulf %7, %260 : vector<18x18xf32>
    %262 = arith.addf %255, %261 : vector<18x18xf32>
    %c5_i32_59 = arith.constant 5 : i32
    %263 = arith.addi %1, %c5_i32_59 : i32
    %264 = arith.index_cast %263 : i32 to index
    %265 = memref.load %arg4[%264] : memref<128xf32, #tpu.memory_space<smem>>
    %266 = vector.broadcast %265 : f32 to vector<18x18xf32>
    %267 = arith.addf %262, %266 : vector<18x18xf32>
    %cst_60 = arith.constant -1.800000e+00 : f32
    %268 = vector.broadcast %cst_60 : f32 to vector<18x18xf32>
    %269 = arith.maximumf %267, %268 : vector<18x18xf32>
    %cst_61 = arith.constant 3.700000e+00 : f32
    %270 = vector.broadcast %cst_61 : f32 to vector<18x18xf32>
    %271 = arith.minimumf %269, %270 : vector<18x18xf32>
    %cst_62 = arith.constant 0.000000e+00 : f32
    %272 = vector.broadcast %cst_62 : f32 to vector<18x18xf32>
    %273 = arith.maximumf %271, %272 : vector<18x18xf32>
    %cst_63 = arith.constant 6.000000e+00 : f32
    %274 = vector.broadcast %cst_63 : f32 to vector<18x18xf32>
    %275 = arith.minimumf %273, %274 : vector<18x18xf32>
    %c20 = arith.constant 20 : index
    %276 = memref.load %arg5[%c20] : memref<32xf32, #tpu.memory_space<smem>>
    %277 = vector.broadcast %276 : f32 to vector<18x18xf32>
    %278 = arith.mulf %275, %277 : vector<18x18xf32>
    %279 = arith.addf %231, %278 : vector<18x18xf32>
    %c21 = arith.constant 21 : index
    %280 = memref.load %arg5[%c21] : memref<32xf32, #tpu.memory_space<smem>>
    %281 = vector.broadcast %280 : f32 to vector<18x18xf32>
    %282 = arith.mulf %275, %281 : vector<18x18xf32>
    %283 = arith.addf %235, %282 : vector<18x18xf32>
    %c22 = arith.constant 22 : index
    %284 = memref.load %arg5[%c22] : memref<32xf32, #tpu.memory_space<smem>>
    %285 = vector.broadcast %284 : f32 to vector<18x18xf32>
    %286 = arith.mulf %275, %285 : vector<18x18xf32>
    %287 = arith.addf %239, %286 : vector<18x18xf32>
    %c23 = arith.constant 23 : index
    %288 = memref.load %arg5[%c23] : memref<32xf32, #tpu.memory_space<smem>>
    %289 = vector.broadcast %288 : f32 to vector<18x18xf32>
    %290 = arith.mulf %275, %289 : vector<18x18xf32>
    %291 = arith.addf %243, %290 : vector<18x18xf32>
    %c6_i32 = arith.constant 6 : i32
    %292 = arith.addi %0, %c6_i32 : i32
    %293 = arith.index_cast %292 : i32 to index
    %294 = memref.load %arg3[%293] : memref<384xf32, #tpu.memory_space<smem>>
    %295 = vector.broadcast %294 : f32 to vector<18x18xf32>
    %296 = arith.mulf %3, %295 : vector<18x18xf32>
    %c8_i32_64 = arith.constant 8 : i32
    %297 = arith.addi %0, %c8_i32_64 : i32
    %c6_i32_65 = arith.constant 6 : i32
    %298 = arith.addi %297, %c6_i32_65 : i32
    %299 = arith.index_cast %298 : i32 to index
    %300 = memref.load %arg3[%299] : memref<384xf32, #tpu.memory_space<smem>>
    %301 = vector.broadcast %300 : f32 to vector<18x18xf32>
    %302 = arith.mulf %5, %301 : vector<18x18xf32>
    %303 = arith.addf %296, %302 : vector<18x18xf32>
    %c16_i32_66 = arith.constant 16 : i32
    %304 = arith.addi %0, %c16_i32_66 : i32
    %c6_i32_67 = arith.constant 6 : i32
    %305 = arith.addi %304, %c6_i32_67 : i32
    %306 = arith.index_cast %305 : i32 to index
    %307 = memref.load %arg3[%306] : memref<384xf32, #tpu.memory_space<smem>>
    %308 = vector.broadcast %307 : f32 to vector<18x18xf32>
    %309 = arith.mulf %7, %308 : vector<18x18xf32>
    %310 = arith.addf %303, %309 : vector<18x18xf32>
    %c6_i32_68 = arith.constant 6 : i32
    %311 = arith.addi %1, %c6_i32_68 : i32
    %312 = arith.index_cast %311 : i32 to index
    %313 = memref.load %arg4[%312] : memref<128xf32, #tpu.memory_space<smem>>
    %314 = vector.broadcast %313 : f32 to vector<18x18xf32>
    %315 = arith.addf %310, %314 : vector<18x18xf32>
    %cst_69 = arith.constant -1.800000e+00 : f32
    %316 = vector.broadcast %cst_69 : f32 to vector<18x18xf32>
    %317 = arith.maximumf %315, %316 : vector<18x18xf32>
    %cst_70 = arith.constant 3.700000e+00 : f32
    %318 = vector.broadcast %cst_70 : f32 to vector<18x18xf32>
    %319 = arith.minimumf %317, %318 : vector<18x18xf32>
    %cst_71 = arith.constant 0.000000e+00 : f32
    %320 = vector.broadcast %cst_71 : f32 to vector<18x18xf32>
    %321 = arith.maximumf %319, %320 : vector<18x18xf32>
    %cst_72 = arith.constant 6.000000e+00 : f32
    %322 = vector.broadcast %cst_72 : f32 to vector<18x18xf32>
    %323 = arith.minimumf %321, %322 : vector<18x18xf32>
    %c24 = arith.constant 24 : index
    %324 = memref.load %arg5[%c24] : memref<32xf32, #tpu.memory_space<smem>>
    %325 = vector.broadcast %324 : f32 to vector<18x18xf32>
    %326 = arith.mulf %323, %325 : vector<18x18xf32>
    %327 = arith.addf %279, %326 : vector<18x18xf32>
    %c25 = arith.constant 25 : index
    %328 = memref.load %arg5[%c25] : memref<32xf32, #tpu.memory_space<smem>>
    %329 = vector.broadcast %328 : f32 to vector<18x18xf32>
    %330 = arith.mulf %323, %329 : vector<18x18xf32>
    %331 = arith.addf %283, %330 : vector<18x18xf32>
    %c26 = arith.constant 26 : index
    %332 = memref.load %arg5[%c26] : memref<32xf32, #tpu.memory_space<smem>>
    %333 = vector.broadcast %332 : f32 to vector<18x18xf32>
    %334 = arith.mulf %323, %333 : vector<18x18xf32>
    %335 = arith.addf %287, %334 : vector<18x18xf32>
    %c27 = arith.constant 27 : index
    %336 = memref.load %arg5[%c27] : memref<32xf32, #tpu.memory_space<smem>>
    %337 = vector.broadcast %336 : f32 to vector<18x18xf32>
    %338 = arith.mulf %323, %337 : vector<18x18xf32>
    %339 = arith.addf %291, %338 : vector<18x18xf32>
    %c7_i32 = arith.constant 7 : i32
    %340 = arith.addi %0, %c7_i32 : i32
    %341 = arith.index_cast %340 : i32 to index
    %342 = memref.load %arg3[%341] : memref<384xf32, #tpu.memory_space<smem>>
    %343 = vector.broadcast %342 : f32 to vector<18x18xf32>
    %344 = arith.mulf %3, %343 : vector<18x18xf32>
    %c8_i32_73 = arith.constant 8 : i32
    %345 = arith.addi %0, %c8_i32_73 : i32
    %c7_i32_74 = arith.constant 7 : i32
    %346 = arith.addi %345, %c7_i32_74 : i32
    %347 = arith.index_cast %346 : i32 to index
    %348 = memref.load %arg3[%347] : memref<384xf32, #tpu.memory_space<smem>>
    %349 = vector.broadcast %348 : f32 to vector<18x18xf32>
    %350 = arith.mulf %5, %349 : vector<18x18xf32>
    %351 = arith.addf %344, %350 : vector<18x18xf32>
    %c16_i32_75 = arith.constant 16 : i32
    %352 = arith.addi %0, %c16_i32_75 : i32
    %c7_i32_76 = arith.constant 7 : i32
    %353 = arith.addi %352, %c7_i32_76 : i32
    %354 = arith.index_cast %353 : i32 to index
    %355 = memref.load %arg3[%354] : memref<384xf32, #tpu.memory_space<smem>>
    %356 = vector.broadcast %355 : f32 to vector<18x18xf32>
    %357 = arith.mulf %7, %356 : vector<18x18xf32>
    %358 = arith.addf %351, %357 : vector<18x18xf32>
    %c7_i32_77 = arith.constant 7 : i32
    %359 = arith.addi %1, %c7_i32_77 : i32
    %360 = arith.index_cast %359 : i32 to index
    %361 = memref.load %arg4[%360] : memref<128xf32, #tpu.memory_space<smem>>
    %362 = vector.broadcast %361 : f32 to vector<18x18xf32>
    %363 = arith.addf %358, %362 : vector<18x18xf32>
    %cst_78 = arith.constant -1.800000e+00 : f32
    %364 = vector.broadcast %cst_78 : f32 to vector<18x18xf32>
    %365 = arith.maximumf %363, %364 : vector<18x18xf32>
    %cst_79 = arith.constant 3.700000e+00 : f32
    %366 = vector.broadcast %cst_79 : f32 to vector<18x18xf32>
    %367 = arith.minimumf %365, %366 : vector<18x18xf32>
    %cst_80 = arith.constant 0.000000e+00 : f32
    %368 = vector.broadcast %cst_80 : f32 to vector<18x18xf32>
    %369 = arith.maximumf %367, %368 : vector<18x18xf32>
    %cst_81 = arith.constant 6.000000e+00 : f32
    %370 = vector.broadcast %cst_81 : f32 to vector<18x18xf32>
    %371 = arith.minimumf %369, %370 : vector<18x18xf32>
    %c28 = arith.constant 28 : index
    %372 = memref.load %arg5[%c28] : memref<32xf32, #tpu.memory_space<smem>>
    %373 = vector.broadcast %372 : f32 to vector<18x18xf32>
    %374 = arith.mulf %371, %373 : vector<18x18xf32>
    %375 = arith.addf %327, %374 : vector<18x18xf32>
    %c29 = arith.constant 29 : index
    %376 = memref.load %arg5[%c29] : memref<32xf32, #tpu.memory_space<smem>>
    %377 = vector.broadcast %376 : f32 to vector<18x18xf32>
    %378 = arith.mulf %371, %377 : vector<18x18xf32>
    %379 = arith.addf %331, %378 : vector<18x18xf32>
    %c30 = arith.constant 30 : index
    %380 = memref.load %arg5[%c30] : memref<32xf32, #tpu.memory_space<smem>>
    %381 = vector.broadcast %380 : f32 to vector<18x18xf32>
    %382 = arith.mulf %371, %381 : vector<18x18xf32>
    %383 = arith.addf %335, %382 : vector<18x18xf32>
    %c31 = arith.constant 31 : index
    %384 = memref.load %arg5[%c31] : memref<32xf32, #tpu.memory_space<smem>>
    %385 = vector.broadcast %384 : f32 to vector<18x18xf32>
    %386 = arith.mulf %371, %385 : vector<18x18xf32>
    %387 = arith.addf %339, %386 : vector<18x18xf32>
    %c0_82 = arith.constant 0 : index
    %388 = memref.load %arg6[%c0_82] : memref<4xf32, #tpu.memory_space<smem>>
    %389 = vector.broadcast %388 : f32 to vector<18x18xf32>
    %390 = arith.addf %375, %389 : vector<18x18xf32>
    %c0_83 = arith.constant 0 : index
    %c0_84 = arith.constant 0 : index
    %c0_85 = arith.constant 0 : index
    %c0_86 = arith.constant 0 : index
    %391 = vector.load %arg7[%c0_83, %c0_84, %c0_85, %c0_86] : memref<1x4x18x18xf32, #tpu.memory_space<vmem>>, vector<1x1x18x18xf32>
    %392 = vector.shape_cast %391 : vector<1x1x18x18xf32> to vector<18x18xf32>
    %393 = vector.shape_cast %390 : vector<18x18xf32> to vector<1x1x18x18xf32>
    tpu.vector_store %arg7[%c0_83, %c0_84, %c0_85, %c0_86], %393 {strides = array<i32>} : memref<1x4x18x18xf32, #tpu.memory_space<vmem>>, vector<1x1x18x18xf32>,
    %c1_87 = arith.constant 1 : index
    %394 = memref.load %arg6[%c1_87] : memref<4xf32, #tpu.memory_space<smem>>
    %395 = vector.broadcast %394 : f32 to vector<18x18xf32>
    %396 = arith.addf %379, %395 : vector<18x18xf32>
    %c0_88 = arith.constant 0 : index
    %c1_89 = arith.constant 1 : index
    %c0_90 = arith.constant 0 : index
    %c0_91 = arith.constant 0 : index
    %397 = vector.load %arg7[%c0_88, %c1_89, %c0_90, %c0_91] : memref<1x4x18x18xf32, #tpu.memory_space<vmem>>, vector<1x1x18x18xf32>
    %398 = vector.shape_cast %397 : vector<1x1x18x18xf32> to vector<18x18xf32>
    %399 = vector.shape_cast %396 : vector<18x18xf32> to vector<1x1x18x18xf32>
    tpu.vector_store %arg7[%c0_88, %c1_89, %c0_90, %c0_91], %399 {strides = array<i32>} : memref<1x4x18x18xf32, #tpu.memory_space<vmem>>, vector<1x1x18x18xf32>,
    %c2_92 = arith.constant 2 : index
    %400 = memref.load %arg6[%c2_92] : memref<4xf32, #tpu.memory_space<smem>>
    %401 = vector.broadcast %400 : f32 to vector<18x18xf32>
    %402 = arith.addf %383, %401 : vector<18x18xf32>
    %c0_93 = arith.constant 0 : index
    %c2_94 = arith.constant 2 : index
    %c0_95 = arith.constant 0 : index
    %c0_96 = arith.constant 0 : index
    %403 = vector.load %arg7[%c0_93, %c2_94, %c0_95, %c0_96] : memref<1x4x18x18xf32, #tpu.memory_space<vmem>>, vector<1x1x18x18xf32>
    %404 = vector.shape_cast %403 : vector<1x1x18x18xf32> to vector<18x18xf32>
    %405 = vector.shape_cast %402 : vector<18x18xf32> to vector<1x1x18x18xf32>
    tpu.vector_store %arg7[%c0_93, %c2_94, %c0_95, %c0_96], %405 {strides = array<i32>} : memref<1x4x18x18xf32, #tpu.memory_space<vmem>>, vector<1x1x18x18xf32>,
    %c3_97 = arith.constant 3 : index
    %406 = memref.load %arg6[%c3_97] : memref<4xf32, #tpu.memory_space<smem>>
    %407 = vector.broadcast %406 : f32 to vector<18x18xf32>
    %408 = arith.addf %387, %407 : vector<18x18xf32>
    %c0_98 = arith.constant 0 : index
    %c3_99 = arith.constant 3 : index
    %c0_100 = arith.constant 0 : index
    %c0_101 = arith.constant 0 : index
    %409 = vector.load %arg7[%c0_98, %c3_99, %c0_100, %c0_101] : memref<1x4x18x18xf32, #tpu.memory_space<vmem>>, vector<1x1x18x18xf32>
    %410 = vector.shape_cast %409 : vector<1x1x18x18xf32> to vector<18x18xf32>
    %411 = vector.shape_cast %408 : vector<18x18xf32> to vector<1x1x18x18xf32>
    tpu.vector_store %arg7[%c0_98, %c3_99, %c0_100, %c0_101], %411 {strides = array<i32>} : memref<1x4x18x18xf32, #tpu.memory_space<vmem>>, vector<1x1x18x18xf32>,
    return
  }
  func.func @transform_0(%arg0: i32, %arg1: i32) -> (i32, i32, i32, i32) {
    %c0_i32 = arith.constant 0 : i32
    %c0_i32_0 = arith.constant 0 : i32
    %c0_i32_1 = arith.constant 0 : i32
    %c0_i32_2 = arith.constant 0 : i32
    return %arg0, %c0_i32, %c0_i32_0, %c0_i32_1 : i32, i32, i32, i32
  }
  func.func @transform_1(%arg0: i32, %arg1: i32) -> i32 {
    %c0_i32 = arith.constant 0 : i32
    %c0_i32_0 = arith.constant 0 : i32
    return %c0_i32 : i32
  }
  func.func @transform_2(%arg0: i32, %arg1: i32) -> i32 {
    %c0_i32 = arith.constant 0 : i32
    %c0_i32_0 = arith.constant 0 : i32
    return %c0_i32 : i32
  }
  func.func @transform_3(%arg0: i32, %arg1: i32) -> i32 {
    %c0_i32 = arith.constant 0 : i32
    %c0_i32_0 = arith.constant 0 : i32
    return %c0_i32 : i32
  }
  func.func @transform_4(%arg0: i32, %arg1: i32) -> i32 {
    %c0_i32 = arith.constant 0 : i32
    %c0_i32_0 = arith.constant 0 : i32
    return %c0_i32 : i32
  }
  func.func @transform_5(%arg0: i32, %arg1: i32) -> (i32, i32, i32, i32) {
    %c16_i32 = arith.constant 16 : i32
    %0 = arith.muli %arg0, %c16_i32 : i32
    %1 = arith.addi %0, %arg1 : i32
    %c0_i32 = arith.constant 0 : i32
    %c0_i32_0 = arith.constant 0 : i32
    %c0_i32_1 = arith.constant 0 : i32
    %c0_i32_2 = arith.constant 0 : i32
    return %1, %c0_i32, %c0_i32_0, %c0_i32_1 : i32, i32, i32, i32
  }
}

</mosaic_0001>

<llo_original>
// kernel: model_forward.1
$region0: #{model_forward.1}
  #allocation0 [shape = 'u32[]', space=smem, size = 0x4, offset = 0x4, fixed_abs, tag = 'smem constant byte address 0x4 - core index']
  #allocation1 [shape = 'u32[144,128]{1,0:T(1,128)}', space=vmem, size = 0x12000, scoped, tag = 'internal scratch']
  %s0 = inlined_call_operand.vmem [shape: f32[1,3,18,18], index: 0, kind: input, shape index: {}]
  %s1 = inlined_call_operand.vmem [shape: f32[384], index: 1, kind: input, shape index: {}]
  %s2 = inlined_call_operand.vmem [shape: f32[128], index: 2, kind: input, shape index: {}]
  %s3 = inlined_call_operand.vmem [shape: f32[32], index: 3, kind: input, shape index: {}]
  %s4 = inlined_call_operand.hbm [shape: f32[4], index: 4, kind: input, shape index: {}]
  %s5 = inlined_call_operand.vmem [shape: f32[16,4,18,18], index: 5, kind: output, shape index: {}]
  %s6 = sld [smem:[#allocation0]]
  $region69: #{model_forward.1} parent=0
    _
  %s8 = ssub.s32 1, %s6
  %s9 = scalar_select 0, %s8, %s6
  $region1: #{model_forward.1} parent=0
    #allocation2 [shape = 'u8[1536]{0}', space=smem, size = 0x600, scoped, tag = 'input window, operand 1, single buffered']
    #allocation3 [shape = 's32[2]{0}', space=sflag, size = 0x8, scoped, tag = 'scoped memory for model_forward.1']
    #allocation4 [shape = 's32[2]{0}', space=sflag, size = 0x8, scoped, tag = 'scoped memory for model_forward.1']
    #allocation5 [shape = 'u8[512]{0}', space=smem, size = 0x200, scoped, tag = 'input window, operand 2, single buffered']
    #allocation6 [shape = 's32[1]{0}', space=sflag, size = 0x4, scoped, tag = 'scoped memory for model_forward.1']
    #allocation7 [shape = 'u8[512]{0}', space=smem, size = 0x200, scoped, tag = 'input window, operand 3, single buffered']
    #allocation8 [shape = 'u8[512]{0}', space=smem, size = 0x200, scoped, tag = 'input window, operand 4, single buffered']
    %10 = vsyncpa [#allocation4], 0
    %11 = vsyncpa [#allocation6], 0
    %12 = vsyncpa [#allocation3], 0
    loop: start=0, step=1, limit=18
    $region2: #{model_forward.1} parent=1 // loop_pre_header
      _
    $region3: #{model_forward.1} parent=1 // loop_header
      %s14 = sphi 0, %s18
      %p15 = scmp.ge.s32.totalorder %s14, 18
      %s21 = sphi 0, %s33
      %s22 = sphi 0, %s29
      %s23 = sphi 0, %s21
      %s24 = sphi 0, %s22
      %s25 = sphi 0, %s23
      %s26 = sphi 0, %s24
      %s36 = sphi 0, %s38
      %s39 = sphi 0, %s36
      %s40 = sphi 0, %s39
      %s56 = sphi 0, %s40
      %s60 = sphi 0, %s60
      %s62 = sphi 0, %s60
      %s63 = sphi 0, %s62
      %s77 = sphi 0, %s63
      %s81 = sphi 0, %s81
      %s83 = sphi 0, %s81
      %s84 = sphi 0, %s83
      %s98 = sphi 0, %s84
      %s102 = sphi 0, %s102
      %s104 = sphi 0, %s102
      %s105 = sphi 0, %s104
      %s119 = sphi 0, %s105
      %s123 = sphi 0, %s123
      %s125 = sphi 0, %s123
      %s126 = sphi 0, %s125
      %s140 = sphi 0, %s126
      %s150 = sphi 0, %s152
      %s153 = sphi 0, %s150
      %s154 = sphi 0, %s153
      %s170 = sphi 0, %s154
    $region4: #{model_forward.1} parent=1 // loop_header_branch
      %17 = sbr.rel (%p15) target = $region8
    $region5: #{model_forward.1} parent=1 // loop_body
      %s19 = ssub.s32 %s14, 1
      %s20 = ssub.s32 %s14, 2
      %s27 = sadd.s32 1, %s22
      %p28 = scmp.ge.s32.totalorder %s27, 16
      %s29 = scalar_select %p28, 0, %s27
      %s30 = sadd.s32 1, %s21
      %s31 = scalar_select %p28, %s30, %s21
      %p32 = scmp.ge.s32.totalorder %s31, 1
      %s33 = scalar_select %p32, 0, %s31
      %s34 = ssub.s32 %s21, %s33
      %p35 = scmp.eq.s32.totalorder %s34, 0
      %s37 = sadd.s32 %s36, 1
      %s38 = scalar_select %p35, %s36, %s37
      %p41 = pneg %p35
      %p42 = scmp.eq.s32.totalorder %s14, 15
      %p43 = por %p41, %p42
      %p44 = scmp.ne.s32.totalorder %s36, %s39
      %p45 = scmp.eq.s32.totalorder %s14, 0
      %p46 = por %p44, %p45
      %p47 = scmp.ne.s32.totalorder %s36, %s39
      %p48 = scmp.eq.s32.totalorder %s19, 15
      %p49 = por %p47, %p48
      %p50 = scmp.ne.s32.totalorder %s39, %s40
      %p51 = scmp.eq.s32.totalorder %s19, 0
      %p52 = por %p50, %p51
      %p53 = scmp.ne.s32.totalorder %s39, %s40
      %p54 = scmp.eq.s32.totalorder %s20, 15
      %p55 = por %p53, %p54
      %p57 = scmp.ne.s32.totalorder %s40, %s56
      %p58 = scmp.eq.s32.totalorder %s20, 0
      %p59 = por %p57, %p58
      %s61 = sadd.s32 %s60, 1
      %p64 = scmp.eq.s32.totalorder %s14, 15
      %p65 = scmp.ne.s32.totalorder %s60, %s62
      %p66 = scmp.eq.s32.totalorder %s14, 0
      %p67 = por %p65, %p66
      %p68 = scmp.ne.s32.totalorder %s60, %s62
      %p69 = scmp.eq.s32.totalorder %s19, 15
      %p70 = por %p68, %p69
      %p71 = scmp.ne.s32.totalorder %s62, %s63
      %p72 = scmp.eq.s32.totalorder %s19, 0
      %p73 = por %p71, %p72
      %p74 = scmp.ne.s32.totalorder %s62, %s63
      %p75 = scmp.eq.s32.totalorder %s20, 15
      %p76 = por %p74, %p75
      %p78 = scmp.ne.s32.totalorder %s63, %s77
      %p79 = scmp.eq.s32.totalorder %s20, 0
      %p80 = por %p78, %p79
      %s82 = sadd.s32 %s81, 1
      %p85 = scmp.eq.s32.totalorder %s14, 15
      %p86 = scmp.ne.s32.totalorder %s81, %s83
      %p87 = scmp.eq.s32.totalorder %s14, 0
      %p88 = por %p86, %p87
      %p89 = scmp.ne.s32.totalorder %s81, %s83
      %p90 = scmp.eq.s32.totalorder %s19, 15
      %p91 = por %p89, %p90
      %p92 = scmp.ne.s32.totalorder %s83, %s84
      %p93 = scmp.eq.s32.totalorder %s19, 0
      %p94 = por %p92, %p93
      %p95 = scmp.ne.s32.totalorder %s83, %s84
      %p96 = scmp.eq.s32.totalorder %s20, 15
      %p97 = por %p95, %p96
      %p99 = scmp.ne.s32.totalorder %s84, %s98
      %p100 = scmp.eq.s32.totalorder %s20, 0
      %p101 = por %p99, %p100
      %s103 = sadd.s32 %s102, 1
      %p106 = scmp.eq.s32.totalorder %s14, 15
      %p107 = scmp.ne.s32.totalorder %s102, %s104
      %p108 = scmp.eq.s32.totalorder %s14, 0
      %p109 = por %p107, %p108
      %p110 = scmp.ne.s32.totalorder %s102, %s104
      %p111 = scmp.eq.s32.totalorder %s19, 15
      %p112 = por %p110, %p111
      %p113 = scmp.ne.s32.totalorder %s104, %s105
      %p114 = scmp.eq.s32.totalorder %s19, 0
      %p115 = por %p113, %p114
      %p116 = scmp.ne.s32.totalorder %s104, %s105
      %p117 = scmp.eq.s32.totalorder %s20, 15
      %p118 = por %p116, %p117
      %p120 = scmp.ne.s32.totalorder %s105, %s119
      %p121 = scmp.eq.s32.totalorder %s20, 0
      %p122 = por %p120, %p121
      %s124 = sadd.s32 %s123, 1
      %p127 = scmp.eq.s32.totalorder %s14, 15
      %p128 = scmp.ne.s32.totalorder %s123, %s125
      %p129 = scmp.eq.s32.totalorder %s14, 0
      %p130 = por %p128, %p129
      %p131 = scmp.ne.s32.totalorder %s123, %s125
      %p132 = scmp.eq.s32.totalorder %s19, 15
      %p133 = por %p131, %p132
      %p134 = scmp.ne.s32.totalorder %s125, %s126
      %p135 = scmp.eq.s32.totalorder %s19, 0
      %p136 = por %p134, %p135
      %p137 = scmp.ne.s32.totalorder %s125, %s126
      %p138 = scmp.eq.s32.totalorder %s20, 15
      %p139 = por %p137, %p138
      %p141 = scmp.ne.s32.totalorder %s126, %s140
      %p142 = scmp.eq.s32.totalorder %s20, 0
      %p143 = por %p141, %p142
      %s144 = smul.u32 %s21, 16
      %s145 = sadd.s32 %s144, %s22
      %s146 = smul.u32 %s33, 16
      %s147 = sadd.s32 %s146, %s29
      %s148 = ssub.s32 %s145, %s147
      %p149 = scmp.eq.s32.totalorder %s148, 0
      %s151 = sadd.s32 %s150, 1
      %s152 = scalar_select %p149, %s150, %s151
      %p155 = pneg %p149
      %p156 = scmp.eq.s32.totalorder %s14, 15
      %p157 = por %p155, %p156
      %p158 = scmp.ne.s32.totalorder %s150, %s153
      %p159 = scmp.eq.s32.totalorder %s14, 0
      %p160 = por %p158, %p159
      %p161 = scmp.ne.s32.totalorder %s150, %s153
      %p162 = scmp.eq.s32.totalorder %s19, 15
      %p163 = por %p161, %p162
      %p164 = scmp.ne.s32.totalorder %s153, %s154
      %p165 = scmp.eq.s32.totalorder %s19, 0
      %p166 = por %p164, %p165
      %p167 = scmp.ne.s32.totalorder %s153, %s154
      %p168 = scmp.eq.s32.totalorder %s20, 15
      %p169 = por %p167, %p168
      %p171 = scmp.ne.s32.totalorder %s154, %s170
      %p172 = scmp.eq.s32.totalorder %s20, 0
      %p173 = por %p171, %p172
      %p174 = scmp.le.s32.totalorder 1, %s14
      %p175 = scmp.lt.s32.totalorder %s14, 17
      %p176 = pnand %p174, %p175
      %p177 = pneg %p176
      // Predicated region
      $region9: #{model_forward.1} parent=5 // pred_check
        _
      $region10: #{model_forward.1} parent=5 // pred_check_branch
        %179 = sbr.rel (%p176) target = $region12
      $region11: #{model_forward.1} parent=5 // pred_region
        %s180 = ssub.s32 %s14, 1
        // Predicated region
        $region13: #{model_forward.1} parent=11 // pred_check
          %p181 = pneg %p52
        $region14: #{model_forward.1} parent=11 // pred_check_branch
          %183 = sbr.rel (%p181) target = $region16
        $region15: #{model_forward.1} parent=11 // pred_region
          %p184 = scmp.lt.s32.totalorder %s23, 0
          %s185 = scalar_select %p184, %s23, 0
          %s186 = smul.addr %s185, 9
          %s187 = smul.addr %s186, 8
          %s188 = scalar_lea.vmem %s0, %s187
        $region16: #{model_forward.1} parent=11 // pred_fallthru
          _
        // Predicated region
        $region17: #{model_forward.1} parent=11 // pred_check
          %p189 = pneg %p73
        $region18: #{model_forward.1} parent=11 // pred_check_branch
          %191 = sbr.rel (%p189) target = $region20
        $region19: #{model_forward.1} parent=11 // pred_region
          %s193 = ssub.s32 48, 48
          %194 = vsyncadd [#allocation4], %s193
          %s196 = sshll.u32 %s1, 4
          %s197 = int_to_ptr.vmem [resolvable:$true] %s196
          %199 = dma.vmem_to_smem %s197, 48, [#allocation2], [#allocation4]
        $region20: #{model_forward.1} parent=11 // pred_fallthru
          _
        // Predicated region
        $region21: #{model_forward.1} parent=11 // pred_check
          %p200 = pneg %p94
        $region22: #{model_forward.1} parent=11 // pred_check_branch
          %202 = sbr.rel (%p200) target = $region24
        $region23: #{model_forward.1} parent=11 // pred_region
          %s204 = ssub.s32 16, 16
          %205 = vsyncadd [#allocation6], %s204
          %s207 = sshll.u32 %s2, 4
          %s208 = int_to_ptr.vmem [resolvable:$true] %s207
          %210 = dma.vmem_to_smem %s208, 16, [#allocation5], [#allocation6]
        $region24: #{model_forward.1} parent=11 // pred_fallthru
          _
        // Predicated region
        $region25: #{model_forward.1} parent=11 // pred_check
          %p211 = pneg %p115
        $region26: #{model_forward.1} parent=11 // pred_check_branch
          %213 = sbr.rel (%p211) target = $region28
        $region27: #{model_forward.1} parent=11 // pred_region
          %s215 = ssub.s32 16, 16
          %216 = vsyncadd [#allocation6], %s215
          %s218 = sshll.u32 %s3, 4
          %s219 = int_to_ptr.vmem [resolvable:$true] %s218
          %221 = dma.vmem_to_smem %s219, 16, [#allocation7], [#allocation6]
        $region28: #{model_forward.1} parent=11 // pred_fallthru
          _
        // Predicated region
        $region29: #{model_forward.1} parent=11 // pred_check
          %p222 = pneg %p136
        $region30: #{model_forward.1} parent=11 // pred_check_branch
          %224 = sbr.rel (%p222) target = $region32
        $region31: #{model_forward.1} parent=11 // pred_region
          %s226 = ssub.s32 16, 16
          %227 = vsyncadd [#allocation3], %s226
          %230 = dma.hbm_to_smem %s4, 16, [#allocation8], [#allocation3]
        $region32: #{model_forward.1} parent=11 // pred_fallthru
          _
      $region12: #{model_forward.1} parent=5 // pred_fallthru
        _
      %p231 = scmp.lt.s32.totalorder %s14, 16
      // Predicated region
      $region33: #{model_forward.1} parent=5 // pred_check
        %p232 = pneg %p231
      $region34: #{model_forward.1} parent=5 // pred_check_branch
        %234 = sbr.rel (%p232) target = $region36
      $region35: #{model_forward.1} parent=5 // pred_region
        _
      $region36: #{model_forward.1} parent=5 // pred_fallthru
        _
      %p235 = scmp.le.s32.totalorder 1, %s14
      %p236 = scmp.lt.s32.totalorder %s14, 17
      %p237 = pnand %p235, %p236
      %p238 = pneg %p237
      // Predicated region
      $region37: #{model_forward.1} parent=5 // pred_check
        _
      $region38: #{model_forward.1} parent=5 // pred_check_branch
        %240 = sbr.rel (%p237) target = $region40
      $region39: #{model_forward.1} parent=5 // pred_region
        %s241 = ssub.s32 %s14, 1
        // Predicated region
        $region41: #{model_forward.1} parent=39 // pred_check
          %p242 = pneg %p73
        $region42: #{model_forward.1} parent=39 // pred_check_branch
          %244 = sbr.rel (%p242) target = $region44
        $region43: #{model_forward.1} parent=39 // pred_region
          %245 = dma.done [#allocation4], 48
        $region44: #{model_forward.1} parent=39 // pred_fallthru
          _
        // Predicated region
        $region45: #{model_forward.1} parent=39 // pred_check
          %p246 = pneg %p94
        $region46: #{model_forward.1} parent=39 // pred_check_branch
          %248 = sbr.rel (%p246) target = $region48
        $region47: #{model_forward.1} parent=39 // pred_region
          %249 = dma.done [#allocation6], 16
        $region48: #{model_forward.1} parent=39 // pred_fallthru
          _
        // Predicated region
        $region49: #{model_forward.1} parent=39 // pred_check
          %p250 = pneg %p115
        $region50: #{model_forward.1} parent=39 // pred_check_branch
          %252 = sbr.rel (%p250) target = $region52
        $region51: #{model_forward.1} parent=39 // pred_region
          %253 = dma.done [#allocation6], 16
        $region52: #{model_forward.1} parent=39 // pred_fallthru
          _
        // Predicated region
        $region53: #{model_forward.1} parent=39 // pred_check
          %p254 = pneg %p136
        $region54: #{model_forward.1} parent=39 // pred_check_branch
          %256 = sbr.rel (%p254) target = $region56
        $region55: #{model_forward.1} parent=39 // pred_region
          %257 = dma.done [#allocation3], 16
        $region56: #{model_forward.1} parent=39 // pred_fallthru
          _
        %258 = sfence
        %p259 = scmp.lt.s32.totalorder %s23, 0
        %s260 = scalar_select %p259, %s23, 0
        %s261 = smul.addr %s260, 9
        %s262 = smul.addr %s261, 8
        %s263 = scalar_lea.vmem %s0, %s262
        %p264 = pneg %p52
        %p265 = pneg %p49
        %p266 = pneg %p73
        %p267 = pneg %p70
        %p268 = pneg %p94
        %p269 = pneg %p91
        %p270 = pneg %p115
        %p271 = pneg %p112
        %p272 = pneg %p136
        %p273 = pneg %p133
        %p274 = pneg %p166
        %p275 = pneg %p163
        %s276 = smul.u32 %s23, 16
        %s277 = sadd.s32 %s276, %s24
        %p278 = scmp.lt.s32.totalorder %s277, 15
        %s279 = scalar_select %p278, %s277, 15
        %s280 = smul.addr %s279, 12
        %s281 = smul.addr %s280, 8
        %s282 = scalar_lea.vmem %s5, %s281
        %p283 = scmp.lt.s32.totalorder %s23, 0
        %s284 = scalar_select %p283, %s23, 0
        %s285 = smul.addr %s284, 9
        %s286 = smul.addr %s285, 8
        %s287 = scalar_lea.vmem %s0, %s286
        %s288 = smul.u32 %s23, 16
        %s289 = sadd.s32 %s288, %s24
        %p290 = scmp.lt.s32.totalorder %s289, 15
        %s291 = scalar_select %p290, %s289, 15
        %s292 = smul.addr %s291, 12
        %s293 = smul.addr %s292, 8
        %s294 = scalar_lea.vmem %s5, %s293
        %s295 = smul.u32 %s23, 16
        %s296 = sadd.s32 %s295, %s24
        %s297 = smul.u32 %s24, 24
        %s298 = smul.u32 %s24, 8
        %v299 = vld [vmem:[%s287] sm:$0xff]
        %v300 = vld [vmem:[%s287 + $0x8] sm:$0xff]
        %v301 = vld [vmem:[%s287 + $0x10] sm:$0x3]
        %s302 = scalar_lea.vmem %s287, 24
        %v303 = vld [vmem:[%s302] sm:$0xff]
        %v304 = vld [vmem:[%s302 + $0x8] sm:$0xff]
        %v305 = vld [vmem:[%s302 + $0x10] sm:$0x3]
        %s306 = scalar_lea.vmem %s287, 48
        %v307 = vld [vmem:[%s306] sm:$0xff]
        %v308 = vld [vmem:[%s306 + $0x8] sm:$0xff]
        %v309 = vld [vmem:[%s306 + $0x10] sm:$0x3]
        %s310 = sld [smem:[#allocation2 + %s297]]
        %v311 = vstv %s310
        %v312 = vmul.f32 %v299, %v311
        %v313 = vmul.f32 %v300, %v311
        %v314 = vmul.f32 %v301, %v311
        %s315 = sadd.s32 %s297, 8
        %s316 = sld [smem:[#allocation2 + %s315]]
        %v317 = vstv %s316
        %v318 = vmul.f32 %v303, %v317
        %v319 = vmul.f32 %v304, %v317
        %v320 = vmul.f32 %v305, %v317
        %v321 = vadd.f32 %v312, %v318
        %v322 = vadd.f32 %v313, %v319
        %v323 = vadd.f32 %v314, %v320
        %s324 = sadd.s32 %s297, 16
        %s325 = sld [smem:[#allocation2 + %s324]]
        %v326 = vstv %s325
        %v327 = vmul.f32 %v307, %v326
        %v328 = vmul.f32 %v308, %v326
        %v329 = vmul.f32 %v309, %v326
        %v330 = vadd.f32 %v321, %v327
        %v331 = vadd.f32 %v322, %v328
        %v332 = vadd.f32 %v323, %v329
        %s333 = sld [smem:[#allocation5 + %s298]]
        %v334 = vstv %s333
        %v335 = vadd.f32 %v330, %v334
        %v336 = vadd.f32 %v331, %v334
        %v337 = vadd.f32 %v332, %v334
        %v338 = vmax.f32 %v335, -1.8
        %v339 = vmax.f32 %v336, -1.8
        %v340 = vmax.f32 %v337, -1.8
        %v341 = vmin.f32 %v338, 3.7
        %v342 = vmin.f32 %v339, 3.7
        %v343 = vmin.f32 %v340, 3.7
        %v344 = vmax.f32 %v341, 0.0
        %v345 = vmax.f32 %v342, 0.0
        %v346 = vmax.f32 %v343, 0.0
        %v347 = vmin.f32 %v344, 6.0
        %v348 = vmin.f32 %v345, 6.0
        %v349 = vmin.f32 %v346, 6.0
        %s350 = sld [smem:[#allocation7]]
        %v351 = vstv %s350
        %v352 = vmul.f32 %v347, %v351
        %v353 = vmul.f32 %v348, %v351
        %v354 = vmul.f32 %v349, %v351
        %s355 = sld [smem:[#allocation7 + $0x1]]
        %v356 = vstv %s355
        %v357 = vmul.f32 %v347, %v356
        %v358 = vmul.f32 %v348, %v356
        %v359 = vmul.f32 %v349, %v356
        %s360 = sld [smem:[#allocation7 + $0x2]]
        %v361 = vstv %s360
        %v362 = vmul.f32 %v347, %v361
        %v363 = vmul.f32 %v348, %v361
        %v364 = vmul.f32 %v349, %v361
        %s365 = sld [smem:[#allocation7 + $0x3]]
        %v366 = vstv %s365
        %v367 = vmul.f32 %v347, %v366
        %v368 = vmul.f32 %v348, %v366
        %v369 = vmul.f32 %v349, %v366
        %s370 = sadd.s32 %s297, 1
        %s371 = sld [smem:[#allocation2 + %s370]]
        %v372 = vstv %s371
        %v373 = vmul.f32 %v299, %v372
        %v374 = vmul.f32 %v300, %v372
        %v375 = vmul.f32 %v301, %v372
        %s376 = sadd.s32 %s297, 9
        %s377 = sld [smem:[#allocation2 + %s376]]
        %v378 = vstv %s377
        %v379 = vmul.f32 %v303, %v378
        %v380 = vmul.f32 %v304, %v378
        %v381 = vmul.f32 %v305, %v378
        %v382 = vadd.f32 %v373, %v379
        %v383 = vadd.f32 %v374, %v380
        %v384 = vadd.f32 %v375, %v381
        %s385 = sadd.s32 %s297, 17
        %s386 = sld [smem:[#allocation2 + %s385]]
        %v387 = vstv %s386
        %v388 = vmul.f32 %v307, %v387
        %v389 = vmul.f32 %v308, %v387
        %v390 = vmul.f32 %v309, %v387
        %v391 = vadd.f32 %v382, %v388
        %v392 = vadd.f32 %v383, %v389
        %v393 = vadd.f32 %v384, %v390
        %s394 = sadd.s32 %s298, 1
        %s395 = sld [smem:[#allocation5 + %s394]]
        %v396 = vstv %s395
        %v397 = vadd.f32 %v391, %v396
        %v398 = vadd.f32 %v392, %v396
        %v399 = vadd.f32 %v393, %v396
        %v400 = vmax.f32 %v397, -1.8
        %v401 = vmax.f32 %v398, -1.8
        %v402 = vmax.f32 %v399, -1.8
        %v403 = vmin.f32 %v400, 3.7
        %v404 = vmin.f32 %v401, 3.7
        %v405 = vmin.f32 %v402, 3.7
        %v406 = vmax.f32 %v403, 0.0
        %v407 = vmax.f32 %v404, 0.0
        %v408 = vmax.f32 %v405, 0.0
        %v409 = vmin.f32 %v406, 6.0
        %v410 = vmin.f32 %v407, 6.0
        %v411 = vmin.f32 %v408, 6.0
        %s412 = sld [smem:[#allocation7 + $0x4]]
        %v413 = vstv %s412
        %v414 = vmul.f32 %v409, %v413
        %v415 = vmul.f32 %v410, %v413
        %v416 = vmul.f32 %v411, %v413
        %v417 = vadd.f32 %v352, %v414
        %v418 = vadd.f32 %v353, %v415
        %v419 = vadd.f32 %v354, %v416
        %s420 = sld [smem:[#allocation7 + $0x5]]
        %v421 = vstv %s420
        %v422 = vmul.f32 %v409, %v421
        %v423 = vmul.f32 %v410, %v421
        %v424 = vmul.f32 %v411, %v421
        %v425 = vadd.f32 %v357, %v422
        %v426 = vadd.f32 %v358, %v423
        %v427 = vadd.f32 %v359, %v424
        %s428 = sld [smem:[#allocation7 + $0x6]]
        %v429 = vstv %s428
        %v430 = vmul.f32 %v409, %v429
        %v431 = vmul.f32 %v410, %v429
        %v432 = vmul.f32 %v411, %v429
        %v433 = vadd.f32 %v362, %v430
        %v434 = vadd.f32 %v363, %v431
        %v435 = vadd.f32 %v364, %v432
        %s436 = sld [smem:[#allocation7 + $0x7]]
        %v437 = vstv %s436
        %v438 = vmul.f32 %v409, %v437
        %v439 = vmul.f32 %v410, %v437
        %v440 = vmul.f32 %v411, %v437
        %v441 = vadd.f32 %v367, %v438
        %v442 = vadd.f32 %v368, %v439
        %v443 = vadd.f32 %v369, %v440
        %s444 = sadd.s32 %s297, 2
        %s445 = sld [smem:[#allocation2 + %s444]]
        %v446 = vstv %s445
        %v447 = vmul.f32 %v299, %v446
        %v448 = vmul.f32 %v300, %v446
        %v449 = vmul.f32 %v301, %v446
        %s450 = sadd.s32 %s297, 10
        %s451 = sld [smem:[#allocation2 + %s450]]
        %v452 = vstv %s451
        %v453 = vmul.f32 %v303, %v452
        %v454 = vmul.f32 %v304, %v452
        %v455 = vmul.f32 %v305, %v452
        %v456 = vadd.f32 %v447, %v453
        %v457 = vadd.f32 %v448, %v454
        %v458 = vadd.f32 %v449, %v455
        %s459 = sadd.s32 %s297, 18
        %s460 = sld [smem:[#allocation2 + %s459]]
        %v461 = vstv %s460
        %v462 = vmul.f32 %v307, %v461
        %v463 = vmul.f32 %v308, %v461
        %v464 = vmul.f32 %v309, %v461
        %v465 = vadd.f32 %v456, %v462
        %v466 = vadd.f32 %v457, %v463
        %v467 = vadd.f32 %v458, %v464
        %s468 = sadd.s32 %s298, 2
        %s469 = sld [smem:[#allocation5 + %s468]]
        %v470 = vstv %s469
        %v471 = vadd.f32 %v465, %v470
        %v472 = vadd.f32 %v466, %v470
        %v473 = vadd.f32 %v467, %v470
        %v474 = vmax.f32 %v471, -1.8
        %v475 = vmax.f32 %v472, -1.8
        %v476 = vmax.f32 %v473, -1.8
        %v477 = vmin.f32 %v474, 3.7
        %v478 = vmin.f32 %v475, 3.7
        %v479 = vmin.f32 %v476, 3.7
        %v480 = vmax.f32 %v477, 0.0
        %v481 = vmax.f32 %v478, 0.0
        %v482 = vmax.f32 %v479, 0.0
        %v483 = vmin.f32 %v480, 6.0
        %v484 = vmin.f32 %v481, 6.0
        %v485 = vmin.f32 %v482, 6.0
        %s486 = sld [smem:[#allocation7 + $0x8]]
        %v487 = vstv %s486
        %v488 = vmul.f32 %v483, %v487
        %v489 = vmul.f32 %v484, %v487
        %v490 = vmul.f32 %v485, %v487
        %v491 = vadd.f32 %v417, %v488
        %v492 = vadd.f32 %v418, %v489
        %v493 = vadd.f32 %v419, %v490
        %s494 = sld [smem:[#allocation7 + $0x9]]
        %v495 = vstv %s494
        %v496 = vmul.f32 %v483, %v495
        %v497 = vmul.f32 %v484, %v495
        %v498 = vmul.f32 %v485, %v495
        %v499 = vadd.f32 %v425, %v496
        %v500 = vadd.f32 %v426, %v497
        %v501 = vadd.f32 %v427, %v498
        %s502 = sld [smem:[#allocation7 + $0xa]]
        %v503 = vstv %s502
        %v504 = vmul.f32 %v483, %v503
        %v505 = vmul.f32 %v484, %v503
        %v506 = vmul.f32 %v485, %v503
        %v507 = vadd.f32 %v433, %v504
        %v508 = vadd.f32 %v434, %v505
        %v509 = vadd.f32 %v435, %v506
        %s510 = sld [smem:[#allocation7 + $0xb]]
        %v511 = vstv %s510
        %v512 = vmul.f32 %v483, %v511
        %v513 = vmul.f32 %v484, %v511
        %v514 = vmul.f32 %v485, %v511
        %v515 = vadd.f32 %v441, %v512
        %v516 = vadd.f32 %v442, %v513
        %v517 = vadd.f32 %v443, %v514
        %s518 = sadd.s32 %s297, 3
        %s519 = sld [smem:[#allocation2 + %s518]]
        %v520 = vstv %s519
        %v521 = vmul.f32 %v299, %v520
        %v522 = vmul.f32 %v300, %v520
        %v523 = vmul.f32 %v301, %v520
        %s524 = sadd.s32 %s297, 11
        %s525 = sld [smem:[#allocation2 + %s524]]
        %v526 = vstv %s525
        %v527 = vmul.f32 %v303, %v526
        %v528 = vmul.f32 %v304, %v526
        %v529 = vmul.f32 %v305, %v526
        %v530 = vadd.f32 %v521, %v527
        %v531 = vadd.f32 %v522, %v528
        %v532 = vadd.f32 %v523, %v529
        %s533 = sadd.s32 %s297, 19
        %s534 = sld [smem:[#allocation2 + %s533]]
        %v535 = vstv %s534
        %v536 = vmul.f32 %v307, %v535
        %v537 = vmul.f32 %v308, %v535
        %v538 = vmul.f32 %v309, %v535
        %v539 = vadd.f32 %v530, %v536
        %v540 = vadd.f32 %v531, %v537
        %v541 = vadd.f32 %v532, %v538
        %s542 = sadd.s32 %s298, 3
        %s543 = sld [smem:[#allocation5 + %s542]]
        %v544 = vstv %s543
        %v545 = vadd.f32 %v539, %v544
        %v546 = vadd.f32 %v540, %v544
        %v547 = vadd.f32 %v541, %v544
        %v548 = vmax.f32 %v545, -1.8
        %v549 = vmax.f32 %v546, -1.8
        %v550 = vmax.f32 %v547, -1.8
        %v551 = vmin.f32 %v548, 3.7
        %v552 = vmin.f32 %v549, 3.7
        %v553 = vmin.f32 %v550, 3.7
        %v554 = vmax.f32 %v551, 0.0
        %v555 = vmax.f32 %v552, 0.0
        %v556 = vmax.f32 %v553, 0.0
        %v557 = vmin.f32 %v554, 6.0
        %v558 = vmin.f32 %v555, 6.0
        %v559 = vmin.f32 %v556, 6.0
        %s560 = sld [smem:[#allocation7 + $0xc]]
        %v561 = vstv %s560
        %v562 = vmul.f32 %v557, %v561
        %v563 = vmul.f32 %v558, %v561
        %v564 = vmul.f32 %v559, %v561
        %v565 = vadd.f32 %v491, %v562
        %v566 = vadd.f32 %v492, %v563
        %v567 = vadd.f32 %v493, %v564
        %s568 = sld [smem:[#allocation7 + $0xd]]
        %v569 = vstv %s568
        %v570 = vmul.f32 %v557, %v569
        %v571 = vmul.f32 %v558, %v569
        %v572 = vmul.f32 %v559, %v569
        %v573 = vadd.f32 %v499, %v570
        %v574 = vadd.f32 %v500, %v571
        %v575 = vadd.f32 %v501, %v572
        %s576 = sld [smem:[#allocation7 + $0xe]]
        %v577 = vstv %s576
        %v578 = vmul.f32 %v557, %v577
        %v579 = vmul.f32 %v558, %v577
        %v580 = vmul.f32 %v559, %v577
        %v581 = vadd.f32 %v507, %v578
        %v582 = vadd.f32 %v508, %v579
        %v583 = vadd.f32 %v509, %v580
        %s584 = sld [smem:[#allocation7 + $0xf]]
        %v585 = vstv %s584
        %v586 = vmul.f32 %v557, %v585
        %v587 = vmul.f32 %v558, %v585
        %v588 = vmul.f32 %v559, %v585
        %v589 = vadd.f32 %v515, %v586
        %v590 = vadd.f32 %v516, %v587
        %v591 = vadd.f32 %v517, %v588
        %s592 = sadd.s32 %s297, 4
        %s593 = sld [smem:[#allocation2 + %s592]]
        %v594 = vstv %s593
        %v595 = vmul.f32 %v299, %v594
        %v596 = vmul.f32 %v300, %v594
        %v597 = vmul.f32 %v301, %v594
        %s598 = sadd.s32 %s297, 12
        %s599 = sld [smem:[#allocation2 + %s598]]
        %v600 = vstv %s599
        %v601 = vmul.f32 %v303, %v600
        %v602 = vmul.f32 %v304, %v600
        %v603 = vmul.f32 %v305, %v600
        %v604 = vadd.f32 %v595, %v601
        %v605 = vadd.f32 %v596, %v602
        %v606 = vadd.f32 %v597, %v603
        %s607 = sadd.s32 %s297, 20
        %s608 = sld [smem:[#allocation2 + %s607]]
        %v609 = vstv %s608
        %v610 = vmul.f32 %v307, %v609
        %v611 = vmul.f32 %v308, %v609
        %v612 = vmul.f32 %v309, %v609
        %v613 = vadd.f32 %v604, %v610
        %v614 = vadd.f32 %v605, %v611
        %v615 = vadd.f32 %v606, %v612
        %s616 = sadd.s32 %s298, 4
        %s617 = sld [smem:[#allocation5 + %s616]]
        %v618 = vstv %s617
        %v619 = vadd.f32 %v613, %v618
        %v620 = vadd.f32 %v614, %v618
        %v621 = vadd.f32 %v615, %v618
        %v622 = vmax.f32 %v619, -1.8
        %v623 = vmax.f32 %v620, -1.8
        %v624 = vmax.f32 %v621, -1.8
        %v625 = vmin.f32 %v622, 3.7
        %v626 = vmin.f32 %v623, 3.7
        %v627 = vmin.f32 %v624, 3.7
        %v628 = vmax.f32 %v625, 0.0
        %v629 = vmax.f32 %v626, 0.0
        %v630 = vmax.f32 %v627, 0.0
        %v631 = vmin.f32 %v628, 6.0
        %v632 = vmin.f32 %v629, 6.0
        %v633 = vmin.f32 %v630, 6.0
        %s634 = sld [smem:[#allocation7 + $0x10]]
        %v635 = vstv %s634
        %v636 = vmul.f32 %v631, %v635
        %v637 = vmul.f32 %v632, %v635
        %v638 = vmul.f32 %v633, %v635
        %v639 = vadd.f32 %v565, %v636
        %v640 = vadd.f32 %v566, %v637
        %v641 = vadd.f32 %v567, %v638
        %s642 = sld [smem:[#allocation7 + $0x11]]
        %v643 = vstv %s642
        %v644 = vmul.f32 %v631, %v643
        %v645 = vmul.f32 %v632, %v643
        %v646 = vmul.f32 %v633, %v643
        %v647 = vadd.f32 %v573, %v644
        %v648 = vadd.f32 %v574, %v645
        %v649 = vadd.f32 %v575, %v646
        %s650 = sld [smem:[#allocation7 + $0x12]]
        %v651 = vstv %s650
        %v652 = vmul.f32 %v631, %v651
        %v653 = vmul.f32 %v632, %v651
        %v654 = vmul.f32 %v633, %v651
        %v655 = vadd.f32 %v581, %v652
        %v656 = vadd.f32 %v582, %v653
        %v657 = vadd.f32 %v583, %v654
        %s658 = sld [smem:[#allocation7 + $0x13]]
        %v659 = vstv %s658
        %v660 = vmul.f32 %v631, %v659
        %v661 = vmul.f32 %v632, %v659
        %v662 = vmul.f32 %v633, %v659
        %v663 = vadd.f32 %v589, %v660
        %v664 = vadd.f32 %v590, %v661
        %v665 = vadd.f32 %v591, %v662
        %s666 = sadd.s32 %s297, 5
        %s667 = sld [smem:[#allocation2 + %s666]]
        %v668 = vstv %s667
        %v669 = vmul.f32 %v299, %v668
        %v670 = vmul.f32 %v300, %v668
        %v671 = vmul.f32 %v301, %v668
        %s672 = sadd.s32 %s297, 13
        %s673 = sld [smem:[#allocation2 + %s672]]
        %v674 = vstv %s673
        %v675 = vmul.f32 %v303, %v674
        %v676 = vmul.f32 %v304, %v674
        %v677 = vmul.f32 %v305, %v674
        %v678 = vadd.f32 %v669, %v675
        %v679 = vadd.f32 %v670, %v676
        %v680 = vadd.f32 %v671, %v677
        %s681 = sadd.s32 %s297, 21
        %s682 = sld [smem:[#allocation2 + %s681]]
        %v683 = vstv %s682
        %v684 = vmul.f32 %v307, %v683
        %v685 = vmul.f32 %v308, %v683
        %v686 = vmul.f32 %v309, %v683
        %v687 = vadd.f32 %v678, %v684
        %v688 = vadd.f32 %v679, %v685
        %v689 = vadd.f32 %v680, %v686
        %s690 = sadd.s32 %s298, 5
        %s691 = sld [smem:[#allocation5 + %s690]]
        %v692 = vstv %s691
        %v693 = vadd.f32 %v687, %v692
        %v694 = vadd.f32 %v688, %v692
        %v695 = vadd.f32 %v689, %v692
        %v696 = vmax.f32 %v693, -1.8
        %v697 = vmax.f32 %v694, -1.8
        %v698 = vmax.f32 %v695, -1.8
        %v699 = vmin.f32 %v696, 3.7
        %v700 = vmin.f32 %v697, 3.7
        %v701 = vmin.f32 %v698, 3.7
        %v702 = vmax.f32 %v699, 0.0
        %v703 = vmax.f32 %v700, 0.0
        %v704 = vmax.f32 %v701, 0.0
        %v705 = vmin.f32 %v702, 6.0
        %v706 = vmin.f32 %v703, 6.0
        %v707 = vmin.f32 %v704, 6.0
        %s708 = sld [smem:[#allocation7 + $0x14]]
        %v709 = vstv %s708
        %v710 = vmul.f32 %v705, %v709
        %v711 = vmul.f32 %v706, %v709
        %v712 = vmul.f32 %v707, %v709
        %v713 = vadd.f32 %v639, %v710
        %v714 = vadd.f32 %v640, %v711
        %v715 = vadd.f32 %v641, %v712
        %s716 = sld [smem:[#allocation7 + $0x15]]
        %v717 = vstv %s716
        %v718 = vmul.f32 %v705, %v717
        %v719 = vmul.f32 %v706, %v717
        %v720 = vmul.f32 %v707, %v717
        %v721 = vadd.f32 %v647, %v718
        %v722 = vadd.f32 %v648, %v719
        %v723 = vadd.f32 %v649, %v720
        %s724 = sld [smem:[#allocation7 + $0x16]]
        %v725 = vstv %s724
        %v726 = vmul.f32 %v705, %v725
        %v727 = vmul.f32 %v706, %v725
        %v728 = vmul.f32 %v707, %v725
        %v729 = vadd.f32 %v655, %v726
        %v730 = vadd.f32 %v656, %v727
        %v731 = vadd.f32 %v657, %v728
        %s732 = sld [smem:[#allocation7 + $0x17]]
        %v733 = vstv %s732
        %v734 = vmul.f32 %v705, %v733
        %v735 = vmul.f32 %v706, %v733
        %v736 = vmul.f32 %v707, %v733
        %v737 = vadd.f32 %v663, %v734
        %v738 = vadd.f32 %v664, %v735
        %v739 = vadd.f32 %v665, %v736
        %s740 = sadd.s32 %s297, 6
        %s741 = sld [smem:[#allocation2 + %s740]]
        %v742 = vstv %s741
        %v743 = vmul.f32 %v299, %v742
        %v744 = vmul.f32 %v300, %v742
        %v745 = vmul.f32 %v301, %v742
        %s746 = sadd.s32 %s297, 14
        %s747 = sld [smem:[#allocation2 + %s746]]
        %v748 = vstv %s747
        %v749 = vmul.f32 %v303, %v748
        %v750 = vmul.f32 %v304, %v748
        %v751 = vmul.f32 %v305, %v748
        %v752 = vadd.f32 %v743, %v749
        %v753 = vadd.f32 %v744, %v750
        %v754 = vadd.f32 %v745, %v751
        %s755 = sadd.s32 %s297, 22
        %s756 = sld [smem:[#allocation2 + %s755]]
        %v757 = vstv %s756
        %v758 = vmul.f32 %v307, %v757
        %v759 = vmul.f32 %v308, %v757
        %v760 = vmul.f32 %v309, %v757
        %v761 = vadd.f32 %v752, %v758
        %v762 = vadd.f32 %v753, %v759
        %v763 = vadd.f32 %v754, %v760
        %s764 = sadd.s32 %s298, 6
        %s765 = sld [smem:[#allocation5 + %s764]]
        %v766 = vstv %s765
        %v767 = vadd.f32 %v761, %v766
        %v768 = vadd.f32 %v762, %v766
        %v769 = vadd.f32 %v763, %v766
        %v770 = vmax.f32 %v767, -1.8
        %v771 = vmax.f32 %v768, -1.8
        %v772 = vmax.f32 %v769, -1.8
        %v773 = vmin.f32 %v770, 3.7
        %v774 = vmin.f32 %v771, 3.7
        %v775 = vmin.f32 %v772, 3.7
        %v776 = vmax.f32 %v773, 0.0
        %v777 = vmax.f32 %v774, 0.0
        %v778 = vmax.f32 %v775, 0.0
        %v779 = vmin.f32 %v776, 6.0
        %v780 = vmin.f32 %v777, 6.0
        %v781 = vmin.f32 %v778, 6.0
        %s782 = sld [smem:[#allocation7 + $0x18]]
        %v783 = vstv %s782
        %v784 = vmul.f32 %v779, %v783
        %v785 = vmul.f32 %v780, %v783
        %v786 = vmul.f32 %v781, %v783
        %v787 = vadd.f32 %v713, %v784
        %v788 = vadd.f32 %v714, %v785
        %v789 = vadd.f32 %v715, %v786
        %s790 = sld [smem:[#allocation7 + $0x19]]
        %v791 = vstv %s790
        %v792 = vmul.f32 %v779, %v791
        %v793 = vmul.f32 %v780, %v791
        %v794 = vmul.f32 %v781, %v791
        %v795 = vadd.f32 %v721, %v792
        %v796 = vadd.f32 %v722, %v793
        %v797 = vadd.f32 %v723, %v794
        %s798 = sld [smem:[#allocation7 + $0x1a]]
        %v799 = vstv %s798
        %v800 = vmul.f32 %v779, %v799
        %v801 = vmul.f32 %v780, %v799
        %v802 = vmul.f32 %v781, %v799
        %v803 = vadd.f32 %v729, %v800
        %v804 = vadd.f32 %v730, %v801
        %v805 = vadd.f32 %v731, %v802
        %s806 = sld [smem:[#allocation7 + $0x1b]]
        %v807 = vstv %s806
        %v808 = vmul.f32 %v779, %v807
        %v809 = vmul.f32 %v780, %v807
        %v810 = vmul.f32 %v781, %v807
        %v811 = vadd.f32 %v737, %v808
        %v812 = vadd.f32 %v738, %v809
        %v813 = vadd.f32 %v739, %v810
        %s814 = sadd.s32 %s297, 7
        %s815 = sld [smem:[#allocation2 + %s814]]
        %v816 = vstv %s815
        %v817 = vmul.f32 %v299, %v816
        %v818 = vmul.f32 %v300, %v816
        %v819 = vmul.f32 %v301, %v816
        %s820 = sadd.s32 %s297, 15
        %s821 = sld [smem:[#allocation2 + %s820]]
        %v822 = vstv %s821
        %v823 = vmul.f32 %v303, %v822
        %v824 = vmul.f32 %v304, %v822
        %v825 = vmul.f32 %v305, %v822
        %v826 = vadd.f32 %v817, %v823
        %v827 = vadd.f32 %v818, %v824
        %v828 = vadd.f32 %v819, %v825
        %s829 = sadd.s32 %s297, 23
        %s830 = sld [smem:[#allocation2 + %s829]]
        %v831 = vstv %s830
        %v832 = vmul.f32 %v307, %v831
        %v833 = vmul.f32 %v308, %v831
        %v834 = vmul.f32 %v309, %v831
        %v835 = vadd.f32 %v826, %v832
        %v836 = vadd.f32 %v827, %v833
        %v837 = vadd.f32 %v828, %v834
        %s838 = sadd.s32 %s298, 7
        %s839 = sld [smem:[#allocation5 + %s838]]
        %v840 = vstv %s839
        %v841 = vadd.f32 %v835, %v840
        %v842 = vadd.f32 %v836, %v840
        %v843 = vadd.f32 %v837, %v840
        %v844 = vmax.f32 %v841, -1.8
        %v845 = vmax.f32 %v842, -1.8
        %v846 = vmax.f32 %v843, -1.8
        %v847 = vmin.f32 %v844, 3.7
        %v848 = vmin.f32 %v845, 3.7
        %v849 = vmin.f32 %v846, 3.7
        %v850 = vmax.f32 %v847, 0.0
        %v851 = vmax.f32 %v848, 0.0
        %v852 = vmax.f32 %v849, 0.0
        %v853 = vmin.f32 %v850, 6.0
        %v854 = vmin.f32 %v851, 6.0
        %v855 = vmin.f32 %v852, 6.0
        %s856 = sld [smem:[#allocation7 + $0x1c]]
        %v857 = vstv %s856
        %v858 = vmul.f32 %v853, %v857
        %v859 = vmul.f32 %v854, %v857
        %v860 = vmul.f32 %v855, %v857
        %v861 = vadd.f32 %v787, %v858
        %v862 = vadd.f32 %v788, %v859
        %v863 = vadd.f32 %v789, %v860
        %s864 = sld [smem:[#allocation7 + $0x1d]]
        %v865 = vstv %s864
        %v866 = vmul.f32 %v853, %v865
        %v867 = vmul.f32 %v854, %v865
        %v868 = vmul.f32 %v855, %v865
        %v869 = vadd.f32 %v795, %v866
        %v870 = vadd.f32 %v796, %v867
        %v871 = vadd.f32 %v797, %v868
        %s872 = sld [smem:[#allocation7 + $0x1e]]
        %v873 = vstv %s872
        %v874 = vmul.f32 %v853, %v873
        %v875 = vmul.f32 %v854, %v873
        %v876 = vmul.f32 %v855, %v873
        %v877 = vadd.f32 %v803, %v874
        %v878 = vadd.f32 %v804, %v875
        %v879 = vadd.f32 %v805, %v876
        %s880 = sld [smem:[#allocation7 + $0x1f]]
        %v881 = vstv %s880
        %v882 = vmul.f32 %v853, %v881
        %v883 = vmul.f32 %v854, %v881
        %v884 = vmul.f32 %v855, %v881
        %v885 = vadd.f32 %v811, %v882
        %v886 = vadd.f32 %v812, %v883
        %v887 = vadd.f32 %v813, %v884
        %s888 = sld [smem:[#allocation8]]
        %v889 = vstv %s888
        %v890 = vadd.f32 %v861, %v889
        %v891 = vadd.f32 %v862, %v889
        %v892 = vadd.f32 %v863, %v889
        %vm893 = vcmask 146432
        %894 = vst.msk [vmem:[%s294] sm:$0xff] %vm893, %v890
        %895 = vst.msk [vmem:[%s294 + $0x8] sm:$0xff] %vm893, %v891
        %vm896 = vcmask 140288
        %897 = vst.msk [vmem:[%s294 + $0x10] sm:$0x3] %vm896, %v892
        %s898 = sld [smem:[#allocation8 + $0x1]]
        %v899 = vstv %s898
        %v900 = vadd.f32 %v869, %v899
        %v901 = vadd.f32 %v870, %v899
        %v902 = vadd.f32 %v871, %v899
        %s903 = scalar_lea.vmem %s294, 24
        %904 = vst.msk [vmem:[%s903] sm:$0xff] %vm893, %v900
        %905 = vst.msk [vmem:[%s903 + $0x8] sm:$0xff] %vm893, %v901
        %906 = vst.msk [vmem:[%s903 + $0x10] sm:$0x3] %vm896, %v902
        %s907 = sld [smem:[#allocation8 + $0x2]]
        %v908 = vstv %s907
        %v909 = vadd.f32 %v877, %v908
        %v910 = vadd.f32 %v878, %v908
        %v911 = vadd.f32 %v879, %v908
        %s912 = scalar_lea.vmem %s294, 48
        %913 = vst.msk [vmem:[%s912] sm:$0xff] %vm893, %v909
        %914 = vst.msk [vmem:[%s912 + $0x8] sm:$0xff] %vm893, %v910
        %915 = vst.msk [vmem:[%s912 + $0x10] sm:$0x3] %vm896, %v911
        %s916 = sld [smem:[#allocation8 + $0x3]]
        %v917 = vstv %s916
        %v918 = vadd.f32 %v885, %v917
        %v919 = vadd.f32 %v886, %v917
        %v920 = vadd.f32 %v887, %v917
        %s921 = scalar_lea.vmem %s294, 72
        %922 = vst.msk [vmem:[%s921] sm:$0xff] %vm893, %v918
        %923 = vst.msk [vmem:[%s921 + $0x8] sm:$0xff] %vm893, %v919
        %924 = vst.msk [vmem:[%s921 + $0x10] sm:$0x3] %vm896, %v920
        %s925 = smul.u32 %s23, 16
        %s926 = sadd.s32 %s925, %s24
        %p927 = scmp.lt.s32.totalorder %s926, 15
        %s928 = scalar_select %p927, %s926, 15
        %s929 = smul.addr %s928, 12
        %s930 = smul.addr %s929, 8
        %s931 = scalar_lea.vmem %s5, %s930
        // Predicated region
        $region57: #{model_forward.1} parent=39 // pred_check
          %p932 = pneg %p163
        $region58: #{model_forward.1} parent=39 // pred_check_branch
          %934 = sbr.rel (%p932) target = $region60
        $region59: #{model_forward.1} parent=39 // pred_region
          %s935 = smul.u32 %s23, 16
          %s936 = sadd.s32 %s935, %s24
        $region60: #{model_forward.1} parent=39 // pred_fallthru
          _
      $region40: #{model_forward.1} parent=5 // pred_fallthru
        _
      %p937 = scmp.le.s32.totalorder 2, %s14
      // Predicated region
      $region61: #{model_forward.1} parent=5 // pred_check
        %p938 = pneg %p937
      $region62: #{model_forward.1} parent=5 // pred_check_branch
        %940 = sbr.rel (%p938) target = $region64
      $region63: #{model_forward.1} parent=5 // pred_region
        %s941 = ssub.s32 %s14, 2
        // Predicated region
        $region65: #{model_forward.1} parent=63 // pred_check
          %p942 = pneg %p169
        $region66: #{model_forward.1} parent=63 // pred_check_branch
          %944 = sbr.rel (%p942) target = $region68
        $region67: #{model_forward.1} parent=63 // pred_region
          %s945 = smul.u32 %s25, 16
          %s946 = sadd.s32 %s945, %s26
          %p947 = scmp.lt.s32.totalorder %s946, 15
          %s948 = scalar_select %p947, %s946, 15
          %s949 = smul.addr %s948, 12
          %s950 = smul.addr %s949, 8
          %s951 = scalar_lea.vmem %s5, %s950
        $region68: #{model_forward.1} parent=63 // pred_fallthru
          _
      $region64: #{model_forward.1} parent=5 // pred_fallthru
        _
    $region6: #{model_forward.1} parent=1 // loop_footer
      %s18 = sadd.s32 1, %s14
    $region7: #{model_forward.1} parent=1 // loop_footer_branch
      %13 = sbr.rel target = $region3
    $region8: #{model_forward.1} parent=1 // loop_exit
      _
    %952 = vsyncpa [#allocation3], 1
    %s953 = scalar_lea.sflag [#allocation3], 1
    %954 = vsyncpa %s953, 1
    %955 = vsyncpa [#allocation4], 1
    %s956 = scalar_lea.sflag [#allocation4], 1
    %957 = vsyncpa %s956, 1
    %958 = vsyncpa [#allocation6], 1

</llo_original>
